<compile_context>
chip_gen: v6e
topology: v6e:2x2x1
jax: 0.10.0
libtpu: 0.0.40
codegen_flags: <defaults>
</compile_context>

<pallas_src>
import functools
import math

import jax
import jax.numpy as jnp
from jax.experimental import pallas as pl
from jax.experimental.pallas import tpu as pltpu


def _round_up(x, m):
    return ((x + m - 1) // m) * m


def _vmem_capacity_bytes():
    try:
        return int(pltpu.get_tpu_info().vmem_capacity_bytes)
    except Exception:
        return 64 * 1024 * 1024          # conservative (v7x-sized) default


# Tiny problems are almost pure padding + per-step grid overhead on the TC;
# a fused XLA expression is faster (review suggested up to ~256; kept
# conservative so moderate sizes still exercise the kernel).
_XLA_FALLBACK_MAX_ROWS = 128


def _contrastive_kernel(k_ref, q_ref, pos_ref, o_ref, *, n_valid, tm):
    """CE row-losses for one (pair, query-tile) grid step.

    k_ref:   (NK, D)   all (padded) rows of this pair -- the "keys"
    q_ref:   (TM, D)   query-row tile, already scaled by 1/temperature
    pos_ref: (1, TM)   positive logit per query row (same scaling)
    o_ref:   (1, TM)   per-row cross-entropy loss (lane dense)
    """
    row_off = pl.multiple_of(pl.program_id(1) * tm, tm)

    # sim_t[k, q] = <keys[k], queries[q]> / temp ; keys on sublanes, queries on
    # lanes.  dot_general contracts the last dims of both operands so no
    # transpose is materialized; operands stay in the feed dtype (bf16) and
    # the MXU accumulates in f32.
    sim_t = jax.lax.dot_general(
        k_ref[...], q_ref[...],
        dimension_numbers=(((1,), (1,)), ((), ())),
        preferred_element_type=jnp.float32)                         # (NK, TM)

    n_keys = sim_t.shape[0]
    key_ids = jax.lax.broadcasted_iota(jnp.int32, (n_keys, 1), 0)       # sublane vec
    qry_ids = jax.lax.broadcasted_iota(jnp.int32, (1, tm), 1) + row_off  # lane vec
    # Drop self-similarity and padded key rows from the logsumexp.  The
    # positive stays in: SimCLR's logits[:, 0] re-enters the denominator.
    masked = (key_ids == qry_ids) | (key_ids >= n_valid)
    sim_t = jnp.where(masked, jnp.float32(-1e30), sim_t)

    col_max = jnp.max(sim_t, axis=0, keepdims=True)                     # (1, TM)
    sumexp = jnp.sum(jnp.exp(sim_t - col_max), axis=0, keepdims=True)
    o_ref[...] = jnp.log(sumexp) + col_max - pos_ref[...]


def _pair_losses_xla(h_pairs, temperature, *, cosine):
    """Plain-XLA path for tiny N (kernel would be almost all padding/overhead)."""
    x = h_pairs.astype(jnp.float32)
    P, N, D = (int(s) for s in x.shape)
    half = N // 2
    if cosine:
        inv_norm = jax.lax.rsqrt(
            jnp.maximum(jnp.sum(x * x, axis=-1, keepdims=True), 1e-16))
        x = x * inv_norm
    sim = jnp.einsum('pnd,pmd->pnm', x, x) / temperature
    pos = jnp.einsum('pnd,pnd->pn', x, jnp.roll(x, -half, axis=1)) / temperature
    sim = jnp.where(jnp.eye(N, dtype=bool)[None], -jnp.inf, sim)
    lse = jax.scipy.special.logsumexp(sim, axis=-1)
    return lse - pos


def contrastive_pair_losses(h_pairs, temperature, *, cosine=False,
                            compute_dtype=jnp.bfloat16):
    """Per-row contrastive cross-entropy losses for a batch of row-pairs.

    h_pairs: (P, N, D).  For pair p, row k's positive partner is row
    (k + N//2) % N and the negatives are every other row (self excluded) --
    exactly nn.CrossEntropyLoss(reduction='none') on [positive, negatives]
    logits with label 0.  Returns (P, N) float32.
    """
    P, N, D = (int(s) for s in h_pairs.shape)
    half = N // 2
    inv_temp = float(1.0 / float(temperature))

    if N <= _XLA_FALLBACK_MAX_ROWS:
        return _pair_losses_xla(h_pairs, temperature, cosine=cosine)

    x32 = h_pairs.astype(jnp.float32)
    if cosine:
        # torch CosineSimilarity: normalize rows once (f32 rsqrt) so the Gram
        # matrix *is* the cosine similarity -- no N^2 divide in the kernel.
        inv_norm = jax.lax.rsqrt(
            jnp.maximum(jnp.sum(x32 * x32, axis=-1, keepdims=True), 1e-16))
        x32 = x32 * inv_norm

    # Keys feed the MXU in `compute_dtype`; the temperature is folded into the
    # query-side cast (no extra pass, no in-kernel scaling, and `pos` below is
    # computed from exactly the same values the kernel sees).
    keys = x32.astype(compute_dtype)
    qrys = (x32 * inv_temp).astype(compute_dtype)

    # Positive logit per row: O(P*N*D) glue, f32 accumulation, lane-dense.
    pos = jnp.einsum('pnd,pnd->pn',
                     jnp.roll(keys, -half, axis=1).astype(jnp.float32),
                     qrys.astype(jnp.float32))                        # (P, N)

    itemsize = jnp.dtype(compute_dtype).itemsize
    sublane = max(8, 32 // itemsize)           # 8 for f32, 16 for bf16
    d_pad = _round_up(max(D, 128), 128)
    # Key (sublane) padding decoupled from the query tile.
    n_key_pad = _round_up(N, sublane)

    vmem_cap = _vmem_capacity_bytes()
    tm = 256 if N >= 512 else 128
    if tm == 256:
        est_256 = (n_key_pad * d_pad * itemsize        # resident keys
                   + 2 * 256 * d_pad * itemsize        # query double buffer
                   + 6 * n_key_pad * 256 * 4)          # f32 stripe + temps
        if est_256 > int(0.6 * vmem_cap):
            tm = 128                                   # small-VMEM parts (v7x)
    n_q_pad = _round_up(N, tm)

    keys_p = jnp.pad(keys, ((0, 0), (0, n_key_pad - N), (0, d_pad - D)))
    qrys_p = jnp.pad(qrys, ((0, 0), (0, n_q_pad - N), (0, d_pad - D)))
    pos_p = jnp.pad(pos, ((0, 0), (0, n_q_pad - N)))[:, None, :]      # (P,1,n_q_pad)

    vmem_est = (n_key_pad * d_pad * itemsize            # keys (single buffer)
                + 2 * tm * d_pad * itemsize             # query tiles (dbl buffer)
                + 6 * n_key_pad * tm * 4                # sim stripe + temps
                + 4 * 8 * tm * 4)                       # pos / out blocks
    vmem_limit = int(min(0.85 * vmem_cap,
                         max(32 * 1024 * 1024, 1.5 * vmem_est)))

    kernel = functools.partial(_contrastive_kernel, n_valid=N, tm=tm)

    def launch(key_pipeline_mode):
        key_kwargs = ({} if key_pipeline_mode is None
                      else {"pipeline_mode": key_pipeline_mode})
        return pl.pallas_call(
            kernel,
            out_shape=jax.ShapeDtypeStruct((P, 1, n_q_pad), jnp.float32),
            grid=(P, n_q_pad // tm),
            in_specs=[
                # Keys: block index only changes with p -> resident across the
                # whole query loop; single buffer halves the dominant VMEM term.
                pl.BlockSpec((None, n_key_pad, d_pad), lambda p, i: (p, 0, 0),
                             **key_kwargs),
                pl.BlockSpec((None, tm, d_pad), lambda p, i: (p, i, 0)),
                pl.BlockSpec((None, 1, tm), lambda p, i: (p, 0, i)),
            ],
            out_specs=pl.BlockSpec((None, 1, tm), lambda p, i: (p, 0, i)),
            compiler_params=pltpu.CompilerParams(
                dimension_semantics=("parallel", "arbitrary"),
                vmem_limit_bytes=vmem_limit),
        )(keys_p, qrys_p, pos_p)

    try:
        out = launch(pl.Buffered(1) if hasattr(pl, "Buffered") else None)
    except Exception:
        # Fallback for Pallas builds that reject single-buffered pipelining.
        out = launch(None)

    return out[:, 0, :N]


class Loss:
    """JAX / Pallas port of the PyTorch contrastive `Loss` module."""

    def __init__(self, batch_size, class_num, temperature_f, temperature_l,
                 device=None, lambda1=0.5, lambda2=0.5,
                 compute_dtype=jnp.bfloat16):
        del device
        self.batch_size = batch_size
        self.class_num = class_num
        self.temperature_f = temperature_f
        self.temperature_l = temperature_l
        self.lambda1 = lambda1
        self.lambda2 = lambda2
        self.compute_dtype = compute_dtype

    @staticmethod
    def _neg_entropy(q):
        p = jnp.sum(q, axis=0)
        p = p / jnp.sum(p)
        return math.log(p.shape[0]) + jnp.sum(p * jnp.log(p))

    # Standalone per-pair APIs (match the torch module's methods).
    def forward_feature(self, h_i, h_j, confidence=None):
        h = jnp.concatenate([h_i, h_j], axis=0)[None]             # (1, 2B, D)
        per_row = contrastive_pair_losses(
            h, self.temperature_f, cosine=False,
            compute_dtype=self.compute_dtype)[0]
        if confidence is not None:
            per_row = per_row * jnp.tile(confidence, 2)           # confidence.repeat(2)
        return jnp.mean(per_row)

    def forward_label(self, q_i, q_j):
        entropy = self._neg_entropy(q_i) + self._neg_entropy(q_j)
        q = jnp.concatenate([q_i.T, q_j.T], axis=0)[None]         # (1, 2C, B)
        per_row = contrastive_pair_losses(
            q, self.temperature_l, cosine=True,
            compute_dtype=self.compute_dtype)[0]
        return jnp.mean(per_row) + entropy

    def __call__(self, hs, qs, confidence=None):
        # Every view pair of a path is batched into ONE pallas_call (leading
        # grid axis) instead of one launch per pair.
        loss_feat = jnp.float32(0.0)
        feat_pairs = [(i, j) for i in range(len(hs)) for j in range(i + 1, len(hs))]
        if feat_pairs:
            h_stack = jnp.stack(
                [jnp.concatenate([hs[i], hs[j]], axis=0) for i, j in feat_pairs])
            per_row = contrastive_pair_losses(
                h_stack, self.temperature_f, cosine=False,
                compute_dtype=self.compute_dtype)                 # (P, 2B)
            if confidence is not None:
                per_row = per_row * jnp.tile(confidence, 2)[None, :]
            loss_feat = jnp.sum(jnp.mean(per_row, axis=1))

        loss_label = jnp.float32(0.0)
        lbl_pairs = [(i, j) for i in range(len(qs)) for j in range(i + 1, len(qs))]
        if lbl_pairs:
            q_stack = jnp.stack(
                [jnp.concatenate([qs[i].T, qs[j].T], axis=0) for i, j in lbl_pairs])
            per_row = contrastive_pair_losses(
                q_stack, self.temperature_l, cosine=True,
                compute_dtype=self.compute_dtype)                 # (P, 2C)
            loss_label = jnp.sum(jnp.mean(per_row, axis=1))
            for i, j in lbl_pairs:
                loss_label = (loss_label + self._neg_entropy(qs[i])
                              + self._neg_entropy(qs[j]))

        return self.lambda1 * loss_feat + self.lambda2 * loss_label

    forward = __call__


# ----------------------------- references -----------------------------------

def _per_row_reference(h, temperature, cosine):
    """Pure-JAX f32 transcription of one torch forward_{feature,label} pair."""
    h = h.astype(jnp.float32)
    N = h.shape[0]
    half = N // 2
    gram = h @ h.T
    if cosine:
        nrm = jnp.sqrt(jnp.sum(h * h, axis=1, keepdims=True))
        gram = gram / jnp.maximum(nrm * nrm.T, 1e-8)
    sim = gram / temperature
    pos = jnp.concatenate([jnp.diagonal(sim, half), jnp.diagonal(sim, -half)])
    neg = jnp.where(jnp.eye(N, dtype=bool), -jnp.inf, sim)
    lse = jax.scipy.special.logsumexp(neg, axis=1)
    return lse - pos


def _reference_total(hs, qs, confidence, temp_f, temp_l, lambda1, lambda2):
    def ne(q):
        p = q.sum(0)
        p = p / p.sum()
        return math.log(p.shape[0]) + (p * jnp.log(p)).sum()

    loss_feat = jnp.float32(0.0)
    for i in range(len(hs)):
        for j in range(i + 1, len(hs)):
            lr = _per_row_reference(jnp.concatenate([hs[i], hs[j]], 0), temp_f, False)
            if confidence is not None:
                lr = lr * jnp.tile(confidence, 2)
            loss_feat = loss_feat + lr.mean()
    loss_label = jnp.float32(0.0)
    for i in range(len(qs)):
        for j in range(i + 1, len(qs)):
            lr = _per_row_reference(jnp.concatenate([qs[i].T, qs[j].T], 0), temp_l, True)
            loss_label = loss_label + lr.mean() + ne(qs[i]) + ne(qs[j])
    return lambda1 * loss_feat + lambda2 * loss_label


if __name__ == "__main__":
    key = jax.random.PRNGKey(0)
    # Feature path: N = 2B = 256 -> Pallas kernel.  Label path: N = 2C = 16 ->
    # fused-XLA small-problem path.
    B, D, C, n_views = 128, 64, 8, 2

    keys = jax.random.split(key, 2 * n_views + 2)
    hs = [jax.random.normal(keys[v], (B, D), dtype=jnp.float32)
          for v in range(n_views)]
    qs = [jax.nn.softmax(
            jax.random.normal(keys[n_views + v], (B, C), dtype=jnp.float32),
            axis=-1)
          for v in range(n_views)]
    confidence = jax.nn.sigmoid(
        jax.random.normal(keys[-2], (B,), dtype=jnp.float32))

    ref = jax.block_until_ready(
        _reference_total(hs, qs, confidence, 0.5, 1.0, 0.5, 0.5))

    # f32 MXU feed: tight check of the kernel math against the reference.
    loss_f32 = Loss(B, C, 0.5, 1.0, lambda1=0.5, lambda2=0.5,
                    compute_dtype=jnp.float32)
    t32 = jax.block_until_ready(loss_f32(hs, qs, confidence=confidence))
    assert jnp.isfinite(t32)
    assert jnp.allclose(t32, ref, rtol=1e-3, atol=1e-3), (t32, ref)

    # bf16 MXU feed (default, fast path): mixed-precision tolerance.
    loss_bf16 = Loss(B, C, 0.5, 1.0, lambda1=0.5, lambda2=0.5)
    t16 = jax.block_until_ready(loss_bf16(hs, qs, confidence=confidence))
    assert jnp.isfinite(t16)
    assert jnp.allclose(t16, ref, rtol=2e-2, atol=2e-2), (t16, ref)

    # Also exercise the Pallas cosine path (large-N label-style input).
    qt = jax.nn.softmax(
        jax.random.normal(keys[-1], (1, 256, 96), dtype=jnp.float32), axis=-1)
    got = contrastive_pair_losses(qt, 1.0, cosine=True,
                                  compute_dtype=jnp.float32)[0]
    got = jax.block_until_ready(got)
    want = _per_row_reference(qt[0], 1.0, True)
    assert jnp.allclose(got, want, rtol=1e-3, atol=1e-3), (got[:4], want[:4])

    print("KERNEL_OK")
</pallas_src>

<mosaic_0001>
module attributes {stable_mosaic.version = 11 : i64} {
  func.func @_contrastive_kernel(%arg0: i32, %arg1: i32, %arg2: memref<1x256x128xf32, #tpu.memory_space<vmem>>, %arg3: memref<1x128x128xf32, #tpu.memory_space<vmem>>, %arg4: memref<1x1x128xf32, #tpu.memory_space<vmem>>, %arg5: memref<1x1x128xf32, #tpu.memory_space<vmem>>) attributes {dimension_semantics = [#tpu.dimension_semantics<parallel>, #tpu.dimension_semantics<arbitrary>], iteration_bounds = array<i64: 1, 2>, scalar_prefetch = 0 : i64, scratch_operands = 0 : i64, tpu.core_type = #tpu.core_type<tc>, window_params = [{pipeline_mode = #tpu.pipeline_mode<synchronous>, transform_indices = @transform_0, window_bounds = array<i64: 1, 256, 128>}, {transform_indices = @transform_1, window_bounds = array<i64: 1, 128, 128>}, {transform_indices = @transform_2, window_bounds = array<i64: 1, 1, 128>}, {transform_indices = @transform_3, window_bounds = array<i64: 1, 1, 128>}]} {
    %c128_i32 = arith.constant 128 : i32
    %0 = arith.muli %arg1, %c128_i32 : i32
    %1 = tpu.assume_multiple %0, 128 : i32
    %c0 = arith.constant 0 : index
    %c0_0 = arith.constant 0 : index
    %c0_1 = arith.constant 0 : index
    %2 = vector.load %arg2[%c0, %c0_0, %c0_1] : memref<1x256x128xf32, #tpu.memory_space<vmem>>, vector<1x256x128xf32>
    %3 = vector.shape_cast %2 : vector<1x256x128xf32> to vector<256x128xf32>
    %c0_2 = arith.constant 0 : index
    %c0_3 = arith.constant 0 : index
    %c0_4 = arith.constant 0 : index
    %4 = vector.load %arg3[%c0_2, %c0_3, %c0_4] : memref<1x128x128xf32, #tpu.memory_space<vmem>>, vector<1x128x128xf32>
    %5 = vector.shape_cast %4 : vector<1x128x128xf32> to vector<128x128xf32>
    %cst = arith.constant dense<0.000000e+00> : vector<256x128xf32>
    %6 = tpu.matmul %3, %5, %cst {dimension_numbers = #tpu.dot_dimension_numbers<[1], [1], [0], [0], [0, 0, 1, 0], [], []>} : vector<256x128xf32>, vector<128x128xf32>, vector<256x128xf32> -> vector<256x128xf32>
    %7 = tpu.iota {dimensions = array<i32: 0>} : vector<256x1xi32>
    %8 = tpu.iota {dimensions = array<i32: 1>} : vector<1x128xi32>
    %9 = vector.broadcast %1 : i32 to vector<1x128xi32>
    %10 = arith.addi %8, %9 : vector<1x128xi32>
    %11 = vector.broadcast %7 : vector<256x1xi32> to vector<256x128xi32>
    %12 = vector.broadcast %10 : vector<1x128xi32> to vector<256x128xi32>
    %13 = arith.cmpi eq, %11, %12 : vector<256x128xi32>
    %c256_i32 = arith.constant 256 : i32
    %14 = vector.broadcast %c256_i32 : i32 to vector<256x1xi32>
    %15 = arith.cmpi sge, %7, %14 : vector<256x1xi32>
    %16 = vector.broadcast %15 : vector<256x1xi1> to vector<256x128xi1>
    %17 = arith.ori %13, %16 : vector<256x128xi1>
    %cst_5 = arith.constant -1.000000e+30 : f32
    %18 = vector.broadcast %cst_5 : f32 to vector<256x128xf32>
    %19 = arith.select %17, %18, %6 : vector<256x128xi1>, vector<256x128xf32>
    %cst_6 = arith.constant dense<0xFF800000> : vector<128xf32>
    %20 = vector.multi_reduction <maximumf>, %19, %cst_6 [0] : vector<256x128xf32> to vector<128xf32>
    %21 = vector.shape_cast %20 : vector<128xf32> to vector<1x128xf32>
    %22 = vector.broadcast %21 : vector<1x128xf32> to vector<256x128xf32>
    %23 = arith.subf %19, %22 : vector<256x128xf32>
    %24 = math.exp %23 : vector<256x128xf32>
    %cst_7 = arith.constant dense<0.000000e+00> : vector<128xf32>
    %25 = vector.multi_reduction <add>, %24, %cst_7 [0] : vector<256x128xf32> to vector<128xf32>
    %26 = vector.shape_cast %25 : vector<128xf32> to vector<1x128xf32>
    %27 = math.log %26 : vector<1x128xf32>
    %28 = arith.addf %27, %21 : vector<1x128xf32>
    %c0_8 = arith.constant 0 : index
    %c0_9 = arith.constant 0 : index
    %c0_10 = arith.constant 0 : index
    %29 = vector.load %arg4[%c0_8, %c0_9, %c0_10] : memref<1x1x128xf32, #tpu.memory_space<vmem>>, vector<1x1x128xf32>
    %30 = vector.shape_cast %29 : vector<1x1x128xf32> to vector<1x128xf32>
    %31 = arith.subf %28, %30 : vector<1x128xf32>
    %c0_11 = arith.constant 0 : index
    %c0_12 = arith.constant 0 : index
    %c0_13 = arith.constant 0 : index
    %32 = vector.load %arg5[%c0_11, %c0_12, %c0_13] : memref<1x1x128xf32, #tpu.memory_space<vmem>>, vector<1x1x128xf32>
    %33 = vector.shape_cast %32 : vector<1x1x128xf32> to vector<1x128xf32>
    %34 = vector.shape_cast %31 : vector<1x128xf32> to vector<1x1x128xf32>
    tpu.vector_store %arg5[%c0_11, %c0_12, %c0_13], %34 {strides = array<i32>} : memref<1x1x128xf32, #tpu.memory_space<vmem>>, vector<1x1x128xf32>,
    return
  }
  func.func @transform_0(%arg0: i32, %arg1: i32) -> (i32, i32, i32) {
    %c0_i32 = arith.constant 0 : i32
    %c0_i32_0 = arith.constant 0 : i32
    %c0_i32_1 = arith.constant 0 : i32
    return %arg0, %c0_i32, %c0_i32_0 : i32, i32, i32
  }
  func.func @transform_1(%arg0: i32, %arg1: i32) -> (i32, i32, i32) {
    %c0_i32 = arith.constant 0 : i32
    %c0_i32_0 = arith.constant 0 : i32
    return %arg0, %arg1, %c0_i32 : i32, i32, i32
  }
  func.func @transform_2(%arg0: i32, %arg1: i32) -> (i32, i32, i32) {
    %c0_i32 = arith.constant 0 : i32
    %c0_i32_0 = arith.constant 0 : i32
    return %arg0, %c0_i32, %arg1 : i32, i32, i32
  }
  func.func @transform_3(%arg0: i32, %arg1: i32) -> (i32, i32, i32) {
    %c0_i32 = arith.constant 0 : i32
    %c0_i32_0 = arith.constant 0 : i32
    return %arg0, %c0_i32, %arg1 : i32, i32, i32
  }
}

module attributes {stable_mosaic.version = 11 : i64} {
  func.func @_contrastive_kernel(%arg0: i32, %arg1: i32, %arg2: memref<1x256x128xf32, #tpu.memory_space<vmem>>, %arg3: memref<1x128x128xf32, #tpu.memory_space<vmem>>, %arg4: memref<1x1x128xf32, #tpu.memory_space<vmem>>, %arg5: memref<1x1x128xf32, #tpu.memory_space<vmem>>) attributes {dimension_semantics = [#tpu.dimension_semantics<parallel>, #tpu.dimension_semantics<arbitrary>], iteration_bounds = array<i64: 1, 2>, scalar_prefetch = 0 : i64, scratch_operands = 0 : i64, tpu.core_type = #tpu.core_type<tc>, window_params = [{transform_indices = @transform_0, window_bounds = array<i64: 1, 256, 128>}, {transform_indices = @transform_1, window_bounds = array<i64: 1, 128, 128>}, {transform_indices = @transform_2, window_bounds = array<i64: 1, 1, 128>}, {transform_indices = @transform_3, window_bounds = array<i64: 1, 1, 128>}]} {
    %c128_i32 = arith.constant 128 : i32
    %0 = arith.muli %arg1, %c128_i32 : i32
    %1 = tpu.assume_multiple %0, 128 : i32
    %c0 = arith.constant 0 : index
    %c0_0 = arith.constant 0 : index
    %c0_1 = arith.constant 0 : index
    %2 = vector.load %arg2[%c0, %c0_0, %c0_1] : memref<1x256x128xf32, #tpu.memory_space<vmem>>, vector<1x256x128xf32>
    %3 = vector.shape_cast %2 : vector<1x256x128xf32> to vector<256x128xf32>
    %c0_2 = arith.constant 0 : index
    %c0_3 = arith.constant 0 : index
    %c0_4 = arith.constant 0 : index
    %4 = vector.load %arg3[%c0_2, %c0_3, %c0_4] : memref<1x128x128xf32, #tpu.memory_space<vmem>>, vector<1x128x128xf32>
    %5 = vector.shape_cast %4 : vector<1x128x128xf32> to vector<128x128xf32>
    %cst = arith.constant dense<0.000000e+00> : vector<256x128xf32>
    %6 = tpu.matmul %3, %5, %cst {dimension_numbers = #tpu.dot_dimension_numbers<[1], [1], [0], [0], [0, 0, 1, 0], [], []>} : vector<256x128xf32>, vector<128x128xf32>, vector<256x128xf32> -> vector<256x128xf32>
    %7 = tpu.iota {dimensions = array<i32: 0>} : vector<256x1xi32>
    %8 = tpu.iota {dimensions = array<i32: 1>} : vector<1x128xi32>
    %9 = vector.broadcast %1 : i32 to vector<1x128xi32>
    %10 = arith.addi %8, %9 : vector<1x128xi32>
    %11 = vector.broadcast %7 : vector<256x1xi32> to vector<256x128xi32>
    %12 = vector.broadcast %10 : vector<1x128xi32> to vector<256x128xi32>
    %13 = arith.cmpi eq, %11, %12 : vector<256x128xi32>
    %c256_i32 = arith.constant 256 : i32
    %14 = vector.broadcast %c256_i32 : i32 to vector<256x1xi32>
    %15 = arith.cmpi sge, %7, %14 : vector<256x1xi32>
    %16 = vector.broadcast %15 : vector<256x1xi1> to vector<256x128xi1>
    %17 = arith.ori %13, %16 : vector<256x128xi1>
    %cst_5 = arith.constant -1.000000e+30 : f32
    %18 = vector.broadcast %cst_5 : f32 to vector<256x128xf32>
    %19 = arith.select %17, %18, %6 : vector<256x128xi1>, vector<256x128xf32>
    %cst_6 = arith.constant dense<0xFF800000> : vector<128xf32>
    %20 = vector.multi_reduction <maximumf>, %19, %cst_6 [0] : vector<256x128xf32> to vector<128xf32>
    %21 = vector.shape_cast %20 : vector<128xf32> to vector<1x128xf32>
    %22 = vector.broadcast %21 : vector<1x128xf32> to vector<256x128xf32>
    %23 = arith.subf %19, %22 : vector<256x128xf32>
    %24 = math.exp %23 : vector<256x128xf32>
    %cst_7 = arith.constant dense<0.000000e+00> : vector<128xf32>
    %25 = vector.multi_reduction <add>, %24, %cst_7 [0] : vector<256x128xf32> to vector<128xf32>
    %26 = vector.shape_cast %25 : vector<128xf32> to vector<1x128xf32>
    %27 = math.log %26 : vector<1x128xf32>
    %28 = arith.addf %27, %21 : vector<1x128xf32>
    %c0_8 = arith.constant 0 : index
    %c0_9 = arith.constant 0 : index
    %c0_10 = arith.constant 0 : index
    %29 = vector.load %arg4[%c0_8, %c0_9, %c0_10] : memref<1x1x128xf32, #tpu.memory_space<vmem>>, vector<1x1x128xf32>
    %30 = vector.shape_cast %29 : vector<1x1x128xf32> to vector<1x128xf32>
    %31 = arith.subf %28, %30 : vector<1x128xf32>
    %c0_11 = arith.constant 0 : index
    %c0_12 = arith.constant 0 : index
    %c0_13 = arith.constant 0 : index
    %32 = vector.load %arg5[%c0_11, %c0_12, %c0_13] : memref<1x1x128xf32, #tpu.memory_space<vmem>>, vector<1x1x128xf32>
    %33 = vector.shape_cast %32 : vector<1x1x128xf32> to vector<1x128xf32>
    %34 = vector.shape_cast %31 : vector<1x128xf32> to vector<1x1x128xf32>
    tpu.vector_store %arg5[%c0_11, %c0_12, %c0_13], %34 {strides = array<i32>} : memref<1x1x128xf32, #tpu.memory_space<vmem>>, vector<1x1x128xf32>,
    return
  }
  func.func @transform_0(%arg0: i32, %arg1: i32) -> (i32, i32, i32) {
    %c0_i32 = arith.constant 0 : i32
    %c0_i32_0 = arith.constant 0 : i32
    %c0_i32_1 = arith.constant 0 : i32
    return %arg0, %c0_i32, %c0_i32_0 : i32, i32, i32
  }
  func.func @transform_1(%arg0: i32, %arg1: i32) -> (i32, i32, i32) {
    %c0_i32 = arith.constant 0 : i32
    %c0_i32_0 = arith.constant 0 : i32
    return %arg0, %arg1, %c0_i32 : i32, i32, i32
  }
  func.func @transform_2(%arg0: i32, %arg1: i32) -> (i32, i32, i32) {
    %c0_i32 = arith.constant 0 : i32
    %c0_i32_0 = arith.constant 0 : i32
    return %arg0, %c0_i32, %arg1 : i32, i32, i32
  }
  func.func @transform_3(%arg0: i32, %arg1: i32) -> (i32, i32, i32) {
    %c0_i32 = arith.constant 0 : i32
    %c0_i32_0 = arith.constant 0 : i32
    return %arg0, %c0_i32, %arg1 : i32, i32, i32
  }
}

</mosaic_0001>

<llo_original>
// kernel: tpu_custom_call.1
$region0: #{tpu_custom_call.1}
  #allocation0 [shape = 'u32[]', space=smem, size = 0x4, offset = 0x4, fixed_abs, tag = 'smem constant byte address 0x4 - core index']
  #allocation1 [shape = 'u32[144,128]{1,0:T(1,128)}', space=vmem, size = 0x12000, scoped, tag = 'internal scratch']
  %s0 = inlined_call_operand.hbm [shape: f32[1,256,128], index: 0, kind: input, shape index: {}]
  %s1 = inlined_call_operand.hbm [shape: f32[1,256,128], index: 1, kind: input, shape index: {}]
  %s2 = inlined_call_operand.vmem [shape: f32[1,1,256], index: 2, kind: input, shape index: {}]
  %s3 = inlined_call_operand.hbm [shape: f32[1,1,256], index: 3, kind: output, shape index: {}]
  %s4 = sld [smem:[#allocation0]]
  $region53: #{tpu_custom_call.1} parent=0
    _
  %s6 = ssub.s32 1, %s4
  %s7 = scalar_select 0, %s6, %s4
  $region1: #{tpu_custom_call.1} parent=0
    #allocation2 [shape = 'u8[131072]{0}', space=vmem, size = 0x20000, scoped, tag = 'input window, operand 0, single buffered']
    #allocation3 [shape = 's32[2]{0}', space=sflag, size = 0x8, scoped, tag = 'scoped memory for tpu_custom_call.1']
    #allocation4 [shape = 's32[2]{0}', space=sflag, size = 0x8, scoped, tag = 'scoped memory for tpu_custom_call.1']
    #allocation5 [shape = 'u8[131072]{0}', space=vmem, size = 0x20000, scoped, tag = 'input window, operand 1']
    #allocation6 [shape = 's32[2]{0}', space=sflag, size = 0x8, scoped, tag = 'scoped memory for tpu_custom_call.1']
    #allocation7 [shape = 'u8[1024]{0}', space=vmem, size = 0x400, scoped, tag = 'output window, operand 0']
    %8 = vsyncpa [#allocation3], 0
    %9 = vsyncpa [#allocation6], 0
    %s10 = scalar_lea.sflag [#allocation6], 1
    %11 = vsyncpa %s10, 0
    %12 = vsyncpa [#allocation4], 0
    %s13 = scalar_lea.sflag [#allocation4], 1
    %14 = vsyncpa %s13, 0
    loop: start=0, step=1, limit=4
    $region2: #{tpu_custom_call.1} parent=1 // loop_pre_header
      _
    $region3: #{tpu_custom_call.1} parent=1 // loop_header
      %s16 = sphi 0, %s20
      %p17 = scmp.ge.s32.totalorder %s16, 4
      %s23 = sphi 0, %s35
      %s24 = sphi 0, %s31
      %s25 = sphi 0, %s23
      %s26 = sphi 0, %s24
      %s27 = sphi 0, %s25
      %s28 = sphi 0, %s26
      %s38 = sphi 0, %s40
      %s41 = sphi 0, %s38
      %s42 = sphi 0, %s41
      %s58 = sphi 0, %s42
      %s66 = sphi 0, %s68
      %s69 = sphi 0, %s66
      %s70 = sphi 0, %s69
      %s86 = sphi 0, %s70
      %s94 = sphi 0, %s96
      %s97 = sphi 0, %s94
      %s98 = sphi 0, %s97
      %s114 = sphi 0, %s98
      %s122 = sphi 0, %s124
      %s125 = sphi 0, %s122
      %s126 = sphi 0, %s125
      %s142 = sphi 0, %s126
    $region4: #{tpu_custom_call.1} parent=1 // loop_header_branch
      %19 = sbr.rel (%p17) target = $region8
    $region5: #{tpu_custom_call.1} parent=1 // loop_body
      %s21 = ssub.s32 %s16, 1
      %s22 = ssub.s32 %s16, 2
      %s29 = sadd.s32 1, %s24
      %p30 = scmp.ge.s32.totalorder %s29, 2
      %s31 = scalar_select %p30, 0, %s29
      %s32 = sadd.s32 1, %s23
      %s33 = scalar_select %p30, %s32, %s23
      %p34 = scmp.ge.s32.totalorder %s33, 1
      %s35 = scalar_select %p34, 0, %s33
      %s36 = ssub.s32 %s23, %s35
      %p37 = scmp.eq.s32.totalorder %s36, 0
      %s39 = sadd.s32 %s38, 1
      %s40 = scalar_select %p37, %s38, %s39
      %p43 = pneg %p37
      %p44 = scmp.eq.s32.totalorder %s16, 1
      %p45 = por %p43, %p44
      %p46 = scmp.ne.s32.totalorder %s38, %s41
      %p47 = scmp.eq.s32.totalorder %s16, 0
      %p48 = por %p46, %p47
      %p49 = scmp.ne.s32.totalorder %s38, %s41
      %p50 = scmp.eq.s32.totalorder %s21, 1
      %p51 = por %p49, %p50
      %p52 = scmp.ne.s32.totalorder %s41, %s42
      %p53 = scmp.eq.s32.totalorder %s21, 0
      %p54 = por %p52, %p53
      %p55 = scmp.ne.s32.totalorder %s41, %s42
      %p56 = scmp.eq.s32.totalorder %s22, 1
      %p57 = por %p55, %p56
      %p59 = scmp.ne.s32.totalorder %s42, %s58
      %p60 = scmp.eq.s32.totalorder %s22, 0
      %p61 = por %p59, %p60
      %s62 = ssub.s32 %s23, %s35
      %s63 = ssub.s32 %s24, %s31
      %s64 = sor.u32 %s62, %s63
      %p65 = scmp.eq.s32.totalorder %s64, 0
      %s67 = sadd.s32 %s66, 1
      %s68 = scalar_select %p65, %s66, %s67
      %p71 = pneg %p65
      %p72 = scmp.eq.s32.totalorder %s16, 1
      %p73 = por %p71, %p72
      %p74 = scmp.ne.s32.totalorder %s66, %s69
      %p75 = scmp.eq.s32.totalorder %s16, 0
      %p76 = por %p74, %p75
      %p77 = scmp.ne.s32.totalorder %s66, %s69
      %p78 = scmp.eq.s32.totalorder %s21, 1
      %p79 = por %p77, %p78
      %p80 = scmp.ne.s32.totalorder %s69, %s70
      %p81 = scmp.eq.s32.totalorder %s21, 0
      %p82 = por %p80, %p81
      %p83 = scmp.ne.s32.totalorder %s69, %s70
      %p84 = scmp.eq.s32.totalorder %s22, 1
      %p85 = por %p83, %p84
      %p87 = scmp.ne.s32.totalorder %s70, %s86
      %p88 = scmp.eq.s32.totalorder %s22, 0
      %p89 = por %p87, %p88
      %s90 = ssub.s32 %s23, %s35
      %s91 = ssub.s32 %s24, %s31
      %s92 = sor.u32 %s90, %s91
      %p93 = scmp.eq.s32.totalorder %s92, 0
      %s95 = sadd.s32 %s94, 1
      %s96 = scalar_select %p93, %s94, %s95
      %p99 = pneg %p93
      %p100 = scmp.eq.s32.totalorder %s16, 1
      %p101 = por %p99, %p100
      %p102 = scmp.ne.s32.totalorder %s94, %s97
      %p103 = scmp.eq.s32.totalorder %s16, 0
      %p104 = por %p102, %p103
      %p105 = scmp.ne.s32.totalorder %s94, %s97
      %p106 = scmp.eq.s32.totalorder %s21, 1
      %p107 = por %p105, %p106
      %p108 = scmp.ne.s32.totalorder %s97, %s98
      %p109 = scmp.eq.s32.totalorder %s21, 0
      %p110 = por %p108, %p109
      %p111 = scmp.ne.s32.totalorder %s97, %s98
      %p112 = scmp.eq.s32.totalorder %s22, 1
      %p113 = por %p111, %p112
      %p115 = scmp.ne.s32.totalorder %s98, %s114
      %p116 = scmp.eq.s32.totalorder %s22, 0
      %p117 = por %p115, %p116
      %s118 = ssub.s32 %s23, %s35
      %s119 = ssub.s32 %s24, %s31
      %s120 = sor.u32 %s118, %s119
      %p121 = scmp.eq.s32.totalorder %s120, 0
      %s123 = sadd.s32 %s122, 1
      %s124 = scalar_select %p121, %s122, %s123
      %p127 = pneg %p121
      %p128 = scmp.eq.s32.totalorder %s16, 1
      %p129 = por %p127, %p128
      %p130 = scmp.ne.s32.totalorder %s122, %s125
      %p131 = scmp.eq.s32.totalorder %s16, 0
      %p132 = por %p130, %p131
      %p133 = scmp.ne.s32.totalorder %s122, %s125
      %p134 = scmp.eq.s32.totalorder %s21, 1
      %p135 = por %p133, %p134
      %p136 = scmp.ne.s32.totalorder %s125, %s126
      %p137 = scmp.eq.s32.totalorder %s21, 0
      %p138 = por %p136, %p137
      %p139 = scmp.ne.s32.totalorder %s125, %s126
      %p140 = scmp.eq.s32.totalorder %s22, 1
      %p141 = por %p139, %p140
      %p143 = scmp.ne.s32.totalorder %s126, %s142
      %p144 = scmp.eq.s32.totalorder %s22, 0
      %p145 = por %p143, %p144
      %p146 = scmp.le.s32.totalorder 1, %s16
      %p147 = scmp.lt.s32.totalorder %s16, 3
      %p148 = pnand %p146, %p147
      %p149 = pneg %p148
      // Predicated region
      $region9: #{tpu_custom_call.1} parent=5 // pred_check
        _
      $region10: #{tpu_custom_call.1} parent=5 // pred_check_branch
        %151 = sbr.rel (%p148) target = $region12
      $region11: #{tpu_custom_call.1} parent=5 // pred_region
        %s152 = ssub.s32 %s16, 1
        // Predicated region
        $region13: #{tpu_custom_call.1} parent=11 // pred_check
          %p153 = pneg %p54
        $region14: #{tpu_custom_call.1} parent=11 // pred_check_branch
          %155 = sbr.rel (%p153) target = $region16
        $region15: #{tpu_custom_call.1} parent=11 // pred_region
          %s157 = ssub.s32 4096, 4096
          %158 = vsyncadd [#allocation3], %s157
          %s159 = smul.addr %s25, 32
          %s160 = smul.addr %s159, 128
          %s161 = scalar_lea.hbm %s0, %s160
          %s162 = sshll.u32 [#allocation2], 4
          %s163 = int_to_ptr.vmem [resolvable:$true] %s162
          %168 = dma.hbm_to_vmem [thread:$0]  %s161, 4096, %s163, [#allocation3], 128, 128, 8
        $region16: #{tpu_custom_call.1} parent=11 // pred_fallthru
          _
      $region12: #{tpu_custom_call.1} parent=5 // pred_fallthru
        _
      %p169 = scmp.lt.s32.totalorder %s16, 2
      // Predicated region
      $region17: #{tpu_custom_call.1} parent=5 // pred_check
        %p170 = pneg %p169
      $region18: #{tpu_custom_call.1} parent=5 // pred_check_branch
        %172 = sbr.rel (%p170) target = $region20
      $region19: #{tpu_custom_call.1} parent=5 // pred_region
        // Predicated region
        $region21: #{tpu_custom_call.1} parent=19 // pred_check
          %p173 = pneg %p76
        $region22: #{tpu_custom_call.1} parent=19 // pred_check_branch
          %175 = sbr.rel (%p173) target = $region24
        $region23: #{tpu_custom_call.1} parent=19 // pred_region
          %s176 = sand.u32 %s66, 1
          %s177 = scalar_lea.sflag [#allocation6], %s176
          %s178 = sand.u32 %s66, 1
          %s179 = smul.addr %s178, 128
          %s180 = scalar_lea.vmem [#allocation5], %s179
          %s181 = smul.u32 16, %s24
          %s183 = ssub.s32 2048, 2048
          %184 = vsyncadd %s177, %s183
          %s185 = smul.addr %s23, 32
          %s186 = sadd.s32 %s181, %s185
          %s187 = smul.addr %s186, 128
          %s188 = scalar_lea.hbm %s1, %s187
          %s189 = sshll.u32 %s180, 4
          %s190 = int_to_ptr.vmem [resolvable:$true] %s189
          %195 = dma.hbm_to_vmem [thread:$0]  %s188, 2048, %s190, %s177, 128, 128, 8
        $region24: #{tpu_custom_call.1} parent=19 // pred_fallthru
          _
        // Predicated region
        $region25: #{tpu_custom_call.1} parent=19 // pred_check
          %p196 = pneg %p104
        $region26: #{tpu_custom_call.1} parent=19 // pred_check_branch
          %198 = sbr.rel (%p196) target = $region28
        $region27: #{tpu_custom_call.1} parent=19 // pred_region
          %p199 = scmp.lt.s32.totalorder %s23, 0
          %s200 = scalar_select %p199, %s23, 0
          %p201 = scmp.lt.s32.totalorder %s24, 1
          %s202 = scalar_select %p201, %s24, 1
          %s203 = smul.addr %s200, 2
          %s204 = sadd.s32 %s202, %s203
          %s205 = scalar_lea.vmem %s2, %s204
        $region28: #{tpu_custom_call.1} parent=19 // pred_fallthru
          _
      $region20: #{tpu_custom_call.1} parent=5 // pred_fallthru
        _
      %p206 = scmp.le.s32.totalorder 1, %s16
      %p207 = scmp.lt.s32.totalorder %s16, 3
      %p208 = pnand %p206, %p207
      %p209 = pneg %p208
      // Predicated region
      $region29: #{tpu_custom_call.1} parent=5 // pred_check
        _
      $region30: #{tpu_custom_call.1} parent=5 // pred_check_branch
        %211 = sbr.rel (%p208) target = $region32
      $region31: #{tpu_custom_call.1} parent=5 // pred_region
        %s212 = ssub.s32 %s16, 1
        // Predicated region
        $region33: #{tpu_custom_call.1} parent=31 // pred_check
          %p213 = pneg %p54
        $region34: #{tpu_custom_call.1} parent=31 // pred_check_branch
          %215 = sbr.rel (%p213) target = $region36
        $region35: #{tpu_custom_call.1} parent=31 // pred_region
          %216 = dma.done [#allocation3], 4096
        $region36: #{tpu_custom_call.1} parent=31 // pred_fallthru
          _
        %s217 = sand.u32 %s69, 1
        %s218 = scalar_lea.sflag [#allocation6], %s217
        %s219 = sand.u32 %s69, 1
        %s220 = smul.addr %s219, 128
        %s221 = scalar_lea.vmem [#allocation5], %s220
        // Predicated region
        $region37: #{tpu_custom_call.1} parent=31 // pred_check
          %p222 = pneg %p82
        $region38: #{tpu_custom_call.1} parent=31 // pred_check_branch
          %224 = sbr.rel (%p222) target = $region40
        $region39: #{tpu_custom_call.1} parent=31 // pred_region
          %225 = dma.done %s218, 2048
        $region40: #{tpu_custom_call.1} parent=31 // pred_fallthru
          _
        %p226 = pneg %p54
        %p227 = pneg %p51
        %s228 = sand.u32 %s69, 1
        %s229 = scalar_lea.sflag [#allocation6], %s228
        %s230 = sand.u32 %s69, 1
        %s231 = smul.addr %s230, 128
        %s232 = scalar_lea.vmem [#allocation5], %s231
        %p233 = pneg %p82
        %p234 = pneg %p79
        %p235 = scmp.lt.s32.totalorder %s25, 0
        %s236 = scalar_select %p235, %s25, 0
        %p237 = scmp.lt.s32.totalorder %s26, 1
        %s238 = scalar_select %p237, %s26, 1
        %s239 = smul.addr %s236, 2
        %s240 = sadd.s32 %s238, %s239
        %s241 = scalar_lea.vmem %s2, %s240
        %p242 = pneg %p110
        %p243 = pneg %p107
        %p244 = pneg %p138
        %p245 = pneg %p135
        %s246 = sand.u32 %s125, 1
        %s247 = scalar_lea.sflag [#allocation4], %s246
        %s248 = sand.u32 %s125, 1
        %s249 = scalar_lea.vmem [#allocation7], %s248
        %s250 = smul.u32 16, %s26
        %p251 = scmp.lt.s32.totalorder %s25, 0
        %s252 = scalar_select %p251, %s25, 0
        %p253 = scmp.lt.s32.totalorder %s26, 1
        %s254 = scalar_select %p253, %s26, 1
        %s255 = smul.addr %s252, 2
        %s256 = sadd.s32 %s254, %s255
        %s257 = scalar_lea.vmem %s2, %s256
        %s258 = smul.u32 %s26, 128
        %v259 = vld [vmem:[#allocation2] sm:$0xff]
        %v260 = vld [vmem:[#allocation2 + $0x8] sm:$0xff]
        %v261 = vld [vmem:[#allocation2 + $0x10] sm:$0xff]
        %v262 = vld [vmem:[#allocation2 + $0x18] sm:$0xff]
        %v263 = vld [vmem:[#allocation2 + $0x20] sm:$0xff]
        %v264 = vld [vmem:[#allocation2 + $0x28] sm:$0xff]
        %v265 = vld [vmem:[#allocation2 + $0x30] sm:$0xff]
        %v266 = vld [vmem:[#allocation2 + $0x38] sm:$0xff]
        %v267 = vld [vmem:[#allocation2 + $0x40] sm:$0xff]
        %v268 = vld [vmem:[#allocation2 + $0x48] sm:$0xff]
        %v269 = vld [vmem:[#allocation2 + $0x50] sm:$0xff]
        %v270 = vld [vmem:[#allocation2 + $0x58] sm:$0xff]
        %v271 = vld [vmem:[#allocation2 + $0x60] sm:$0xff]
        %v272 = vld [vmem:[#allocation2 + $0x68] sm:$0xff]
        %v273 = vld [vmem:[#allocation2 + $0x70] sm:$0xff]
        %v274 = vld [vmem:[#allocation2 + $0x78] sm:$0xff]
        %v275 = vld [vmem:[#allocation2 + $0x80] sm:$0xff]
        %v276 = vld [vmem:[#allocation2 + $0x88] sm:$0xff]
        %v277 = vld [vmem:[#allocation2 + $0x90] sm:$0xff]
        %v278 = vld [vmem:[#allocation2 + $0x98] sm:$0xff]
        %v279 = vld [vmem:[#allocation2 + $0xa0] sm:$0xff]
        %v280 = vld [vmem:[#allocation2 + $0xa8] sm:$0xff]
        %v281 = vld [vmem:[#allocation2 + $0xb0] sm:$0xff]
        %v282 = vld [vmem:[#allocation2 + $0xb8] sm:$0xff]
        %v283 = vld [vmem:[#allocation2 + $0xc0] sm:$0xff]
        %v284 = vld [vmem:[#allocation2 + $0xc8] sm:$0xff]
        %v285 = vld [vmem:[#allocation2 + $0xd0] sm:$0xff]
        %v286 = vld [vmem:[#allocation2 + $0xd8] sm:$0xff]
        %v287 = vld [vmem:[#allocation2 + $0xe0] sm:$0xff]
        %v288 = vld [vmem:[#allocation2 + $0xe8] sm:$0xff]
        %v289 = vld [vmem:[#allocation2 + $0xf0] sm:$0xff]
        %v290 = vld [vmem:[#allocation2 + $0xf8] sm:$0xff]
        %v291 = vld [vmem:[%s221] sm:$0xff]
        %v292 = vld [vmem:[%s221 + $0x8] sm:$0xff]
        %v293 = vld [vmem:[%s221 + $0x10] sm:$0xff]
        %v294 = vld [vmem:[%s221 + $0x18] sm:$0xff]
        %v295 = vld [vmem:[%s221 + $0x20] sm:$0xff]
        %v296 = vld [vmem:[%s221 + $0x28] sm:$0xff]
        %v297 = vld [vmem:[%s221 + $0x30] sm:$0xff]
        %v298 = vld [vmem:[%s221 + $0x38] sm:$0xff]
        %v299 = vld [vmem:[%s221 + $0x40] sm:$0xff]
        %v300 = vld [vmem:[%s221 + $0x48] sm:$0xff]
        %v301 = vld [vmem:[%s221 + $0x50] sm:$0xff]
        %v302 = vld [vmem:[%s221 + $0x58] sm:$0xff]
        %v303 = vld [vmem:[%s221 + $0x60] sm:$0xff]
        %v304 = vld [vmem:[%s221 + $0x68] sm:$0xff]
        %v305 = vld [vmem:[%s221 + $0x70] sm:$0xff]
        %v306 = vld [vmem:[%s221 + $0x78] sm:$0xff]
        %307 = vmatprep.subr.mxu0 0.0
        %308 = vmatpush1.xpose.msra.mxu0 %v306
        %309 = vmatprep.subr.mxu0 0.0
        %310 = vmatpush1.xpose.msra.mxu0 %v305
        %311 = vmatprep.subr.mxu0 0.0
        %312 = vmatpush1.xpose.msra.mxu0 %v304
        %313 = vmatprep.subr.mxu0 0.0
        %314 = vmatpush1.xpose.msra.mxu0 %v303
        %315 = vmatprep.subr.mxu0 0.0
        %316 = vmatpush1.xpose.msra.mxu0 %v302
        %317 = vmatprep.subr.mxu0 0.0
        %318 = vmatpush1.xpose.msra.mxu0 %v301
        %319 = vmatprep.subr.mxu0 0.0
        %320 = vmatpush1.xpose.msra.mxu0 %v300
        %321 = vmatprep.subr.mxu0 0.0
        %322 = vmatpush1.xpose.msra.mxu0 %v299
        %323 = vmatprep.subr.mxu0 0.0
        %324 = vmatpush1.xpose.msra.mxu0 %v298
        %325 = vmatprep.subr.mxu0 0.0
        %326 = vmatpush1.xpose.msra.mxu0 %v297
        %327 = vmatprep.subr.mxu0 0.0
        %328 = vmatpush1.xpose.msra.mxu0 %v296
        %329 = vmatprep.subr.mxu0 0.0
        %330 = vmatpush1.xpose.msra.mxu0 %v295
        %331 = vmatprep.subr.mxu0 0.0
        %332 = vmatpush1.xpose.msra.mxu0 %v294
        %333 = vmatprep.subr.mxu0 0.0
        %334 = vmatpush1.xpose.msra.mxu0 %v293
        %335 = vmatprep.subr.mxu0 0.0
        %336 = vmatpush1.xpose.msra.mxu0 %v292
        %337 = vmatprep.subr.mxu0 0.0
        %338 = vmatpush1.xpose.msra.mxu0 %v291
        %339 = vmatprep.subr.mxu0 0.0
        %340 = vmatpush2.xpose.msra.mxu0 0.0
        %341 = vmatprep.subr.mxu0 0.0
        %342 = vmatpush2.xpose.msra.mxu0 0.0
        %343 = vmatprep.subr.mxu0 0.0
        %344 = vmatpush2.xpose.msra.mxu0 0.0
        %345 = vmatprep.subr.mxu0 0.0
        %346 = vmatpush2.xpose.msra.mxu0 0.0
        %347 = vmatprep.subr.mxu0 0.0
        %348 = vmatpush2.xpose.msra.mxu0 0.0
        %349 = vmatprep.subr.mxu0 0.0
        %350 = vmatpush2.xpose.msra.mxu0 0.0
        %351 = vmatprep.subr.mxu0 0.0
        %352 = vmatpush2.xpose.msra.mxu0 0.0
        %353 = vmatprep.subr.mxu0 0.0
        %354 = vmatpush2.xpose.msra.mxu0 0.0
        %355 = vmatprep.subr.mxu0 0.0
        %356 = vmatpush2.xpose.msra.mxu0 0.0
        %357 = vmatprep.subr.mxu0 0.0
        %358 = vmatpush2.xpose.msra.mxu0 0.0
        %359 = vmatprep.subr.mxu0 0.0
        %360 = vmatpush2.xpose.msra.mxu0 0.0
        %361 = vmatprep.subr.mxu0 0.0
        %362 = vmatpush2.xpose.msra.mxu0 0.0
        %363 = vmatprep.subr.mxu0 0.0
        %364 = vmatpush2.xpose.msra.mxu0 0.0
        %365 = vmatprep.subr.mxu0 0.0
        %366 = vmatpush2.xpose.msra.mxu0 0.0
        %367 = vmatprep.subr.mxu0 0.0
        %368 = vmatpush2.xpose.msra.mxu0 0.0
        %369 = vmatprep.subr.mxu0 0.0
        %370 = vmatpush2.xpose.msra.mxu0 0.0
        %371 = vmatprep.mubr.f32.mxu0 0.0
        %372 = vmatmul.mubr.f32.gmra.mxu0 %v259
        %v373 = vpop.f32.mrf.mxu0
        %v374 = vadd.f32 0.0, %v373
        %v375 = vpop.f32.mrf.mxu0
        %376 = vmatprep.mubr.f32.mxu0 0.0
        %377 = vmatmul.mubr.f32.gmra.mxu0 %v260
        %v378 = vpop.f32.mrf.mxu0
        %v379 = vadd.f32 0.0, %v378
        %v380 = vpop.f32.mrf.mxu0
        %381 = vmatprep.mubr.f32.mxu0 0.0
        %382 = vmatmul.mubr.f32.gmra.mxu0 %v261
        %v383 = vpop.f32.mrf.mxu0
        %v384 = vadd.f32 0.0, %v383
        %v385 = vpop.f32.mrf.mxu0
        %386 = vmatprep.mubr.f32.mxu0 0.0
        %387 = vmatmul.mubr.f32.gmra.mxu0 %v262
        %v388 = vpop.f32.mrf.mxu0
        %v389 = vadd.f32 0.0, %v388
        %v390 = vpop.f32.mrf.mxu0
        %391 = vmatprep.mubr.f32.mxu0 0.0
        %392 = vmatmul.mubr.f32.gmra.mxu0 %v263
        %v393 = vpop.f32.mrf.mxu0
        %v394 = vadd.f32 0.0, %v393
        %v395 = vpop.f32.mrf.mxu0
        %396 = vmatprep.mubr.f32.mxu0 0.0
        %397 = vmatmul.mubr.f32.gmra.mxu0 %v264
        %v398 = vpop.f32.mrf.mxu0
        %v399 = vadd.f32 0.0, %v398
        %v400 = vpop.f32.mrf.mxu0
        %401 = vmatprep.mubr.f32.mxu0 0.0
        %402 = vmatmul.mubr.f32.gmra.mxu0 %v265
        %v403 = vpop.f32.mrf.mxu0
        %v404 = vadd.f32 0.0, %v403
        %v405 = vpop.f32.mrf.mxu0
        %406 = vmatprep.mubr.f32.mxu0 0.0
        %407 = vmatmul.mubr.f32.gmra.mxu0 %v266
        %v408 = vpop.f32.mrf.mxu0
        %v409 = vadd.f32 0.0, %v408
        %v410 = vpop.f32.mrf.mxu0
        %411 = vmatprep.mubr.f32.mxu0 0.0
        %412 = vmatmul.mubr.f32.gmra.mxu0 %v267
        %v413 = vpop.f32.mrf.mxu0
        %v414 = vadd.f32 0.0, %v413
        %v415 = vpop.f32.mrf.mxu0
        %416 = vmatprep.mubr.f32.mxu0 0.0
        %417 = vmatmul.mubr.f32.gmra.mxu0 %v268
        %v418 = vpop.f32.mrf.mxu0
        %v419 = vadd.f32 0.0, %v418
        %v420 = vpop.f32.mrf.mxu0
        %421 = vmatprep.mubr.f32.mxu0 0.0
        %422 = vmatmul.mubr.f32.gmra.mxu0 %v269
        %v423 = vpop.f32.mrf.mxu0
        %v424 = vadd.f32 0.0, %v423
        %v425 = vpop.f32.mrf.mxu0
        %426 = vmatprep.mubr.f32.mxu0 0.0
        %427 = vmatmul.mubr.f32.gmra.mxu0 %v270
        %v428 = vpop.f32.mrf.mxu0
        %v429 = vadd.f32 0.0, %v428
        %v430 = vpop.f32.mrf.mxu0
        %431 = vmatprep.mubr.f32.mxu0 0.0
        %432 = vmatmul.mubr.f32.gmra.mxu0 %v271
        %v433 = vpop.f32.mrf.mxu0
        %v434 = vadd.f32 0.0, %v433
        %v435 = vpop.f32.mrf.mxu0
        %436 = vmatprep.mubr.f32.mxu0 0.0
        %437 = vmatmul.mubr.f32.gmra.mxu0 %v272
        %v438 = vpop.f32.mrf.mxu0
        %v439 = vadd.f32 0.0, %v438
        %v440 = vpop.f32.mrf.mxu0
        %441 = vmatprep.mubr.f32.mxu0 0.0
        %442 = vmatmul.mubr.f32.gmra.mxu0 %v273
        %v443 = vpop.f32.mrf.mxu0
        %v444 = vadd.f32 0.0, %v443
        %v445 = vpop.f32.mrf.mxu0
        %446 = vmatprep.mubr.f32.mxu0 0.0
        %447 = vmatmul.mubr.f32.gmra.mxu0 %v274
        %v448 = vpop.f32.mrf.mxu0
        %v449 = vadd.f32 0.0, %v448
        %v450 = vpop.f32.mrf.mxu0
        %451 = vmatprep.mubr.f32.mxu0 0.0
        %452 = vmatmul.mubr.f32.gmra.mxu0 %v275
        %v453 = vpop.f32.mrf.mxu0
        %v454 = vadd.f32 0.0, %v453
        %v455 = vpop.f32.mrf.mxu0
        %456 = vmatprep.mubr.f32.mxu0 0.0
        %457 = vmatmul.mubr.f32.gmra.mxu0 %v276
        %v458 = vpop.f32.mrf.mxu0
        %v459 = vadd.f32 0.0, %v458
        %v460 = vpop.f32.mrf.mxu0
        %461 = vmatprep.mubr.f32.mxu0 0.0
        %462 = vmatmul.mubr.f32.gmra.mxu0 %v277
        %v463 = vpop.f32.mrf.mxu0
        %v464 = vadd.f32 0.0, %v463
        %v465 = vpop.f32.mrf.mxu0
        %466 = vmatprep.mubr.f32.mxu0 0.0
        %467 = vmatmul.mubr.f32.gmra.mxu0 %v278
        %v468 = vpop.f32.mrf.mxu0
        %v469 = vadd.f32 0.0, %v468
        %v470 = vpop.f32.mrf.mxu0
        %471 = vmatprep.mubr.f32.mxu0 0.0
        %472 = vmatmul.mubr.f32.gmra.mxu0 %v279
        %v473 = vpop.f32.mrf.mxu0
        %v474 = vadd.f32 0.0, %v473
        %v475 = vpop.f32.mrf.mxu0
        %476 = vmatprep.mubr.f32.mxu0 0.0
        %477 = vmatmul.mubr.f32.gmra.mxu0 %v280
        %v478 = vpop.f32.mrf.mxu0
        %v479 = vadd.f32 0.0, %v478
        %v480 = vpop.f32.mrf.mxu0
        %481 = vmatprep.mubr.f32.mxu0 0.0
        %482 = vmatmul.mubr.f32.gmra.mxu0 %v281
        %v483 = vpop.f32.mrf.mxu0
        %v484 = vadd.f32 0.0, %v483
        %v485 = vpop.f32.mrf.mxu0
        %486 = vmatprep.mubr.f32.mxu0 0.0
        %487 = vmatmul.mubr.f32.gmra.mxu0 %v282
        %v488 = vpop.f32.mrf.mxu0
        %v489 = vadd.f32 0.0, %v488
        %v490 = vpop.f32.mrf.mxu0
        %491 = vmatprep.mubr.f32.mxu0 0.0
        %492 = vmatmul.mubr.f32.gmra.mxu0 %v283
        %v493 = vpop.f32.mrf.mxu0
        %v494 = vadd.f32 0.0, %v493
        %v495 = vpop.f32.mrf.mxu0
        %496 = vmatprep.mubr.f32.mxu0 0.0
        %497 = vmatmul.mubr.f32.gmra.mxu0 %v284
        %v498 = vpop.f32.mrf.mxu0
        %v499 = vadd.f32 0.0, %v498
        %v500 = vpop.f32.mrf.mxu0
        %501 = vmatprep.mubr.f32.mxu0 0.0
        %502 = vmatmul.mubr.f32.gmra.mxu0 %v285
        %v503 = vpop.f32.mrf.mxu0
        %v504 = vadd.f32 0.0, %v503
        %v505 = vpop.f32.mrf.mxu0
        %506 = vmatprep.mubr.f32.mxu0 0.0
        %507 = vmatmul.mubr.f32.gmra.mxu0 %v286
        %v508 = vpop.f32.mrf.mxu0
        %v509 = vadd.f32 0.0, %v508
        %v510 = vpop.f32.mrf.mxu0
        %511 = vmatprep.mubr.f32.mxu0 0.0
        %512 = vmatmul.mubr.f32.gmra.mxu0 %v287
        %v513 = vpop.f32.mrf.mxu0
        %v514 = vadd.f32 0.0, %v513
        %v515 = vpop.f32.mrf.mxu0
        %516 = vmatprep.mubr.f32.mxu0 0.0
        %517 = vmatmul.mubr.f32.gmra.mxu0 %v288
        %v518 = vpop.f32.mrf.mxu0
        %v519 = vadd.f32 0.0, %v518
        %v520 = vpop.f32.mrf.mxu0
        %521 = vmatprep.mubr.f32.mxu0 0.0
        %522 = vmatmul.mubr.f32.gmra.mxu0 %v289
        %v523 = vpop.f32.mrf.mxu0
        %v524 = vadd.f32 0.0, %v523
        %v525 = vpop.f32.mrf.mxu0
        %526 = vmatprep.mubr.f32.mxu0 0.0
        %527 = vmatmul.mubr.f32.gmra.mxu0 %v290
        %v528 = vpop.f32.mrf.mxu0
        %v529 = vadd.f32 0.0, %v528
        %v530 = vpop.f32.mrf.mxu0
        %531 = vdwg.mxu0
        %v532 = vlaneseq
        %v533 = vshrl.u32 %v532, 7
        %v534 = vadd.s32 %v533, 8
        %v535 = vadd.s32 %v533, 16
        %v536 = vadd.s32 %v533, 24
        %v537 = vadd.s32 %v533, 32
        %v538 = vadd.s32 %v533, 40
        %v539 = vadd.s32 %v533, 48
        %v540 = vadd.s32 %v533, 56
        %v541 = vadd.s32 %v533, 64
        %v542 = vadd.s32 %v533, 72
        %v543 = vadd.s32 %v533, 80
        %v544 = vadd.s32 %v533, 88
        %v545 = vadd.s32 %v533, 96
        %v546 = vadd.s32 %v533, 104
        %v547 = vadd.s32 %v533, 112
        %v548 = vadd.s32 %v533, 120
        %v549 = vadd.s32 %v533, 128
        %v550 = vadd.s32 %v533, 136
        %v551 = vadd.s32 %v533, 144
        %v552 = vadd.s32 %v533, 152
        %v553 = vadd.s32 %v533, 160
        %v554 = vadd.s32 %v533, 168
        %v555 = vadd.s32 %v533, 176
        %v556 = vadd.s32 %v533, 184
        %v557 = vadd.s32 %v533, 192
        %v558 = vadd.s32 %v533, 200
        %v559 = vadd.s32 %v533, 208
        %v560 = vadd.s32 %v533, 216
        %v561 = vadd.s32 %v533, 224
        %v562 = vadd.s32 %v533, 232
        %v563 = vadd.s32 %v533, 240
        %v564 = vadd.s32 %v533, 248
        %v565 = vlaneseq
        %v566 = vand.u32 %v565, 127
        %v567 = vstv %s258
        %v568 = vadd.s32 %v566, %v567
        %vm569 = vcmp.eq.s32.totalorder %v533, %v568
        %vm570 = vcmp.eq.s32.totalorder %v534, %v568
        %vm571 = vcmp.eq.s32.totalorder %v535, %v568
        %vm572 = vcmp.eq.s32.totalorder %v536, %v568
        %vm573 = vcmp.eq.s32.totalorder %v537, %v568
        %vm574 = vcmp.eq.s32.totalorder %v538, %v568
        %vm575 = vcmp.eq.s32.totalorder %v539, %v568
        %vm576 = vcmp.eq.s32.totalorder %v540, %v568
        %vm577 = vcmp.eq.s32.totalorder %v541, %v568
        %vm578 = vcmp.eq.s32.totalorder %v542, %v568
        %vm579 = vcmp.eq.s32.totalorder %v543, %v568
        %vm580 = vcmp.eq.s32.totalorder %v544, %v568
        %vm581 = vcmp.eq.s32.totalorder %v545, %v568
        %vm582 = vcmp.eq.s32.totalorder %v546, %v568
        %vm583 = vcmp.eq.s32.totalorder %v547, %v568
        %vm584 = vcmp.eq.s32.totalorder %v548, %v568
        %vm585 = vcmp.eq.s32.totalorder %v549, %v568
        %vm586 = vcmp.eq.s32.totalorder %v550, %v568
        %vm587 = vcmp.eq.s32.totalorder %v551, %v568
        %vm588 = vcmp.eq.s32.totalorder %v552, %v568
        %vm589 = vcmp.eq.s32.totalorder %v553, %v568
        %vm590 = vcmp.eq.s32.totalorder %v554, %v568
        %vm591 = vcmp.eq.s32.totalorder %v555, %v568
        %vm592 = vcmp.eq.s32.totalorder %v556, %v568
        %vm593 = vcmp.eq.s32.totalorder %v557, %v568
        %vm594 = vcmp.eq.s32.totalorder %v558, %v568
        %vm595 = vcmp.eq.s32.totalorder %v559, %v568
        %vm596 = vcmp.eq.s32.totalorder %v560, %v568
        %vm597 = vcmp.eq.s32.totalorder %v561, %v568
        %vm598 = vcmp.eq.s32.totalorder %v562, %v568
        %vm599 = vcmp.eq.s32.totalorder %v563, %v568
        %vm600 = vcmp.eq.s32.totalorder %v564, %v568
        %vm601 = vcmp.ge.s32.totalorder %v533, 256
        %vm602 = vcmp.ge.s32.totalorder %v534, 256
        %vm603 = vcmp.ge.s32.totalorder %v535, 256
        %vm604 = vcmp.ge.s32.totalorder %v536, 256
        %vm605 = vcmp.ge.s32.totalorder %v537, 256
        %vm606 = vcmp.ge.s32.totalorder %v538, 256
        %vm607 = vcmp.ge.s32.totalorder %v539, 256
        %vm608 = vcmp.ge.s32.totalorder %v540, 256
        %vm609 = vcmp.ge.s32.totalorder %v541, 256
        %vm610 = vcmp.ge.s32.totalorder %v542, 256
        %vm611 = vcmp.ge.s32.totalorder %v543, 256
        %vm612 = vcmp.ge.s32.totalorder %v544, 256
        %vm613 = vcmp.ge.s32.totalorder %v545, 256
        %vm614 = vcmp.ge.s32.totalorder %v546, 256
        %vm615 = vcmp.ge.s32.totalorder %v547, 256
        %vm616 = vcmp.ge.s32.totalorder %v548, 256
        %vm617 = vcmp.ge.s32.totalorder %v549, 256
        %vm618 = vcmp.ge.s32.totalorder %v550, 256
        %vm619 = vcmp.ge.s32.totalorder %v551, 256
        %vm620 = vcmp.ge.s32.totalorder %v552, 256
        %vm621 = vcmp.ge.s32.totalorder %v553, 256
        %vm622 = vcmp.ge.s32.totalorder %v554, 256
        %vm623 = vcmp.ge.s32.totalorder %v555, 256
        %vm624 = vcmp.ge.s32.totalorder %v556, 256
        %vm625 = vcmp.ge.s32.totalorder %v557, 256
        %vm626 = vcmp.ge.s32.totalorder %v558, 256
        %vm627 = vcmp.ge.s32.totalorder %v559, 256
        %vm628 = vcmp.ge.s32.totalorder %v560, 256
        %vm629 = vcmp.ge.s32.totalorder %v561, 256
        %vm630 = vcmp.ge.s32.totalorder %v562, 256
        %vm631 = vcmp.ge.s32.totalorder %v563, 256
        %vm632 = vcmp.ge.s32.totalorder %v564, 256
        %v633 = vsel %vm601, 1, 0
        %v634 = vsel %vm602, 1, 0
        %v635 = vsel %vm603, 1, 0
        %v636 = vsel %vm604, 1, 0
        %v637 = vsel %vm605, 1, 0
        %v638 = vsel %vm606, 1, 0
        %v639 = vsel %vm607, 1, 0
        %v640 = vsel %vm608, 1, 0
        %v641 = vsel %vm609, 1, 0
        %v642 = vsel %vm610, 1, 0
        %v643 = vsel %vm611, 1, 0
        %v644 = vsel %vm612, 1, 0
        %v645 = vsel %vm613, 1, 0
        %v646 = vsel %vm614, 1, 0
        %v647 = vsel %vm615, 1, 0
        %v648 = vsel %vm616, 1, 0
        %v649 = vsel %vm617, 1, 0
        %v650 = vsel %vm618, 1, 0
        %v651 = vsel %vm619, 1, 0
        %v652 = vsel %vm620, 1, 0
        %v653 = vsel %vm621, 1, 0
        %v654 = vsel %vm622, 1, 0
        %v655 = vsel %vm623, 1, 0
        %v656 = vsel %vm624, 1, 0
        %v657 = vsel %vm625, 1, 0
        %v658 = vsel %vm626, 1, 0
        %v659 = vsel %vm627, 1, 0
        %v660 = vsel %vm628, 1, 0
        %v661 = vsel %vm629, 1, 0
        %v662 = vsel %vm630, 1, 0
        %v663 = vsel %vm631, 1, 0
        %v664 = vsel %vm632, 1, 0
        %vm665 = vcmp.eq.s32.totalorder %v633, 1
        %vm666 = vcmp.eq.s32.totalorder %v634, 1
        %vm667 = vcmp.eq.s32.totalorder %v635, 1
        %vm668 = vcmp.eq.s32.totalorder %v636, 1
        %vm669 = vcmp.eq.s32.totalorder %v637, 1
        %vm670 = vcmp.eq.s32.totalorder %v638, 1
        %vm671 = vcmp.eq.s32.totalorder %v639, 1
        %vm672 = vcmp.eq.s32.totalorder %v640, 1
        %vm673 = vcmp.eq.s32.totalorder %v641, 1
        %vm674 = vcmp.eq.s32.totalorder %v642, 1
        %vm675 = vcmp.eq.s32.totalorder %v643, 1
        %vm676 = vcmp.eq.s32.totalorder %v644, 1
        %vm677 = vcmp.eq.s32.totalorder %v645, 1
        %vm678 = vcmp.eq.s32.totalorder %v646, 1
        %vm679 = vcmp.eq.s32.totalorder %v647, 1
        %vm680 = vcmp.eq.s32.totalorder %v648, 1
        %vm681 = vcmp.eq.s32.totalorder %v649, 1
        %vm682 = vcmp.eq.s32.totalorder %v650, 1
        %vm683 = vcmp.eq.s32.totalorder %v651, 1
        %vm684 = vcmp.eq.s32.totalorder %v652, 1
        %vm685 = vcmp.eq.s32.totalorder %v653, 1
        %vm686 = vcmp.eq.s32.totalorder %v654, 1
        %vm687 = vcmp.eq.s32.totalorder %v655, 1
        %vm688 = vcmp.eq.s32.totalorder %v656, 1
        %vm689 = vcmp.eq.s32.totalorder %v657, 1
        %vm690 = vcmp.eq.s32.totalorder %v658, 1
        %vm691 = vcmp.eq.s32.totalorder %v659, 1
        %vm692 = vcmp.eq.s32.totalorder %v660, 1
        %vm693 = vcmp.eq.s32.totalorder %v661, 1
        %vm694 = vcmp.eq.s32.totalorder %v662, 1
        %vm695 = vcmp.eq.s32.totalorder %v663, 1
        %vm696 = vcmp.eq.s32.totalorder %v664, 1
        %vm697 = vmor %vm569, %vm665
        %vm698 = vmor %vm570, %vm666
        %vm699 = vmor %vm571, %vm667
        %vm700 = vmor %vm572, %vm668
        %vm701 = vmor %vm573, %vm669
        %vm702 = vmor %vm574, %vm670
        %vm703 = vmor %vm575, %vm671
        %vm704 = vmor %vm576, %vm672
        %vm705 = vmor %vm577, %vm673
        %vm706 = vmor %vm578, %vm674
        %vm707 = vmor %vm579, %vm675
        %vm708 = vmor %vm580, %vm676
        %vm709 = vmor %vm581, %vm677
        %vm710 = vmor %vm582, %vm678
        %vm711 = vmor %vm583, %vm679
        %vm712 = vmor %vm584, %vm680
        %vm713 = vmor %vm585, %vm681
        %vm714 = vmor %vm586, %vm682
        %vm715 = vmor %vm587, %vm683
        %vm716 = vmor %vm588, %vm684
        %vm717 = vmor %vm589, %vm685
        %vm718 = vmor %vm590, %vm686
        %vm719 = vmor %vm591, %vm687
        %vm720 = vmor %vm592, %vm688
        %vm721 = vmor %vm593, %vm689
        %vm722 = vmor %vm594, %vm690
        %vm723 = vmor %vm595, %vm691
        %vm724 = vmor %vm596, %vm692
        %vm725 = vmor %vm597, %vm693
        %vm726 = vmor %vm598, %vm694
        %vm727 = vmor %vm599, %vm695
        %vm728 = vmor %vm600, %vm696
        %v729 = vsel %vm697, -1e+30, %v374
        %v730 = vsel %vm698, -1e+30, %v379
        %v731 = vsel %vm699, -1e+30, %v384
        %v732 = vsel %vm700, -1e+30, %v389
        %v733 = vsel %vm701, -1e+30, %v394
        %v734 = vsel %vm702, -1e+30, %v399
        %v735 = vsel %vm703, -1e+30, %v404
        %v736 = vsel %vm704, -1e+30, %v409
        %v737 = vsel %vm705, -1e+30, %v414
        %v738 = vsel %vm706, -1e+30, %v419
        %v739 = vsel %vm707, -1e+30, %v424
        %v740 = vsel %vm708, -1e+30, %v429
        %v741 = vsel %vm709, -1e+30, %v434
        %v742 = vsel %vm710, -1e+30, %v439
        %v743 = vsel %vm711, -1e+30, %v444
        %v744 = vsel %vm712, -1e+30, %v449
        %v745 = vsel %vm713, -1e+30, %v454
        %v746 = vsel %vm714, -1e+30, %v459
        %v747 = vsel %vm715, -1e+30, %v464
        %v748 = vsel %vm716, -1e+30, %v469
        %v749 = vsel %vm717, -1e+30, %v474
        %v750 = vsel %vm718, -1e+30, %v479
        %v751 = vsel %vm719, -1e+30, %v484
        %v752 = vsel %vm720, -1e+30, %v489
        %v753 = vsel %vm721, -1e+30, %v494
        %v754 = vsel %vm722, -1e+30, %v499
        %v755 = vsel %vm723, -1e+30, %v504
        %v756 = vsel %vm724, -1e+30, %v509
        %v757 = vsel %vm725, -1e+30, %v514
        %v758 = vsel %vm726, -1e+30, %v519
        %v759 = vsel %vm727, -1e+30, %v524
        %v760 = vsel %vm728, -1e+30, %v529
        %v761 = vmax.f32 %v729, %v733
        %v762 = vmax.f32 %v730, %v734
        %v763 = vmax.f32 %v731, %v735
        %v764 = vmax.f32 %v732, %v736
        %v765 = vmax.f32 %v761, %v737
        %v766 = vmax.f32 %v762, %v738
        %v767 = vmax.f32 %v763, %v739
        %v768 = vmax.f32 %v764, %v740
        %v769 = vmax.f32 %v765, %v741
        %v770 = vmax.f32 %v766, %v742
        %v771 = vmax.f32 %v767, %v743
        %v772 = vmax.f32 %v768, %v744
        %v773 = vmax.f32 %v769, %v745
        %v774 = vmax.f32 %v770, %v746
        %v775 = vmax.f32 %v771, %v747
        %v776 = vmax.f32 %v772, %v748
        %v777 = vmax.f32 %v773, %v749
        %v778 = vmax.f32 %v774, %v750
        %v779 = vmax.f32 %v775, %v751
        %v780 = vmax.f32 %v776, %v752
        %v781 = vmax.f32 %v777, %v753
        %v782 = vmax.f32 %v778, %v754
        %v783 = vmax.f32 %v779, %v755
        %v784 = vmax.f32 %v780, %v756
        %v785 = vmax.f32 %v781, %v757
        %v786 = vmax.f32 %v782, %v758
        %v787 = vmax.f32 %v783, %v759
        %v788 = vmax.f32 %v784, %v760
        %v789 = vmax.f32 %v785, %v786
        %v790 = vmax.f32 %v787, %v788
        %v791 = vmax.f32 %v789, %v790
        %v792 = vrot.slane %v791, 4
        %v793 = vmax.f32 %v791, %v792
        %v794 = vrot.slane %v793, 2
        %v795 = vmax.f32 %v793, %v794
        %v796 = vrot.slane %v795, 1
        %v797 = vmax.f32 %v795, %v796
        %v798 = vsub.f32 %v729, %v797
        %v799 = vsub.f32 %v730, %v797
        %v800 = vsub.f32 %v731, %v797
        %v801 = vsub.f32 %v732, %v797
        %v802 = vsub.f32 %v733, %v797
        %v803 = vsub.f32 %v734, %v797
        %v804 = vsub.f32 %v735, %v797
        %v805 = vsub.f32 %v736, %v797
        %v806 = vsub.f32 %v737, %v797
        %v807 = vsub.f32 %v738, %v797
        %v808 = vsub.f32 %v739, %v797
        %v809 = vsub.f32 %v740, %v797
        %v810 = vsub.f32 %v741, %v797
        %v811 = vsub.f32 %v742, %v797
        %v812 = vsub.f32 %v743, %v797
        %v813 = vsub.f32 %v744, %v797
        %v814 = vsub.f32 %v745, %v797
        %v815 = vsub.f32 %v746, %v797
        %v816 = vsub.f32 %v747, %v797
        %v817 = vsub.f32 %v748, %v797
        %v818 = vsub.f32 %v749, %v797
        %v819 = vsub.f32 %v750, %v797
        %v820 = vsub.f32 %v751, %v797
        %v821 = vsub.f32 %v752, %v797
        %v822 = vsub.f32 %v753, %v797
        %v823 = vsub.f32 %v754, %v797
        %v824 = vsub.f32 %v755, %v797
        %v825 = vsub.f32 %v756, %v797
        %v826 = vsub.f32 %v757, %v797
        %v827 = vsub.f32 %v758, %v797
        %v828 = vsub.f32 %v759, %v797
        %v829 = vsub.f32 %v760, %v797
        %v830 = vmul.f32 %v798, 1.442695
        %v831 = vpow.pop %v830
        %v832 = vmul.f32 %v799, 1.442695
        %v833 = vpow.pop %v832
        %v834 = vmul.f32 %v800, 1.442695
        %v835 = vpow.pop %v834
        %v836 = vmul.f32 %v801, 1.442695
        %v837 = vpow.pop %v836
        %v838 = vmul.f32 %v802, 1.442695
        %v839 = vpow.pop %v838
        %v840 = vmul.f32 %v803, 1.442695
        %v841 = vpow.pop %v840
        %v842 = vmul.f32 %v804, 1.442695
        %v843 = vpow.pop %v842
        %v844 = vmul.f32 %v805, 1.442695
        %v845 = vpow.pop %v844
        %v846 = vmul.f32 %v806, 1.442695
        %v847 = vpow.pop %v846
        %v848 = vmul.f32 %v807, 1.442695
        %v849 = vpow.pop %v848
        %v850 = vmul.f32 %v808, 1.442695
        %v851 = vpow.pop %v850
        %v852 = vmul.f32 %v809, 1.442695
        %v853 = vpow.pop %v852
        %v854 = vmul.f32 %v810, 1.442695
        %v855 = vpow.pop %v854
        %v856 = vmul.f32 %v811, 1.442695
        %v857 = vpow.pop %v856
        %v858 = vmul.f32 %v812, 1.442695
        %v859 = vpow.pop %v858
        %v860 = vmul.f32 %v813, 1.442695
        %v861 = vpow.pop %v860
        %v862 = vmul.f32 %v814, 1.442695
        %v863 = vpow.pop %v862
        %v864 = vmul.f32 %v815, 1.442695
        %v865 = vpow.pop %v864
        %v866 = vmul.f32 %v816, 1.442695
        %v867 = vpow.pop %v866
        %v868 = vmul.f32 %v817, 1.442695
        %v869 = vpow.pop %v868
        %v870 = vmul.f32 %v818, 1.442695
        %v871 = vpow.pop %v870
        %v872 = vmul.f32 %v819, 1.442695
        %v873 = vpow.pop %v872
        %v874 = vmul.f32 %v820, 1.442695
        %v875 = vpow.pop %v874
        %v876 = vmul.f32 %v821, 1.442695
        %v877 = vpow.pop %v876
        %v878 = vmul.f32 %v822, 1.442695
        %v879 = vpow.pop %v878
        %v880 = vmul.f32 %v823, 1.442695
        %v881 = vpow.pop %v880
        %v882 = vmul.f32 %v824, 1.442695
        %v883 = vpow.pop %v882
        %v884 = vmul.f32 %v825, 1.442695
        %v885 = vpow.pop %v884
        %v886 = vmul.f32 %v826, 1.442695
        %v887 = vpow.pop %v886
        %v888 = vmul.f32 %v827, 1.442695
        %v889 = vpow.pop %v888
        %v890 = vmul.f32 %v828, 1.442695
        %v891 = vpow.pop %v890
        %v892 = vmul.f32 %v829, 1.442695
        %v893 = vpow.pop %v892
        %v894 = vadd.f32 %v831, %v833
        %v895 = vadd.f32 %v894, %v835
        %v896 = vadd.f32 %v895, %v837
        %v897 = vadd.f32 %v896, %v839
        %v898 = vadd.f32 %v897, %v841
        %v899 = vadd.f32 %v898, %v843
        %v900 = vadd.f32 %v899, %v845
        %v901 = vadd.f32 %v900, %v847
        %v902 = vadd.f32 %v901, %v849
        %v903 = vadd.f32 %v902, %v851
        %v904 = vadd.f32 %v903, %v853
        %v905 = vadd.f32 %v904, %v855
        %v906 = vadd.f32 %v905, %v857
        %v907 = vadd.f32 %v906, %v859
        %v908 = vadd.f32 %v907, %v861
        %v909 = vadd.f32 %v908, %v863
        %v910 = vadd.f32 %v909, %v865
        %v911 = vadd.f32 %v910, %v867
        %v912 = vadd.f32 %v911, %v869
        %v913 = vadd.f32 %v912, %v871
        %v914 = vadd.f32 %v913, %v873
        %v915 = vadd.f32 %v914, %v875
        %v916 = vadd.f32 %v915, %v877
        %v917 = vadd.f32 %v916, %v879
        %v918 = vadd.f32 %v917, %v881
        %v919 = vadd.f32 %v918, %v883
        %v920 = vadd.f32 %v919, %v885
        %v921 = vadd.f32 %v920, %v887
        %v922 = vadd.f32 %v921, %v889
        %v923 = vadd.f32 %v922, %v891
        %v924 = vadd.f32 %v923, %v893
        %v925 = vrot.slane %v924, 4
        %v926 = vadd.f32 %v924, %v925
        %v927 = vrot.slane %v926, 2
        %v928 = vadd.f32 %v926, %v927
        %v929 = vrot.slane %v928, 1
        %v930 = vadd.f32 %v928, %v929
        %v931 = vlog2.pop %v930
        %v932 = vmul.f32 %v931, 0.6931472
        %v933 = vadd.f32 %v932, %v797
        %v934 = vld [vmem:[%s257] sm:$0x1]
        %v935 = vsub.f32 %v933, %v934
        %936 = vst [vmem:[%s249] sm:$0x1] %v935
        %s937 = sand.u32 %s125, 1
        %s938 = scalar_lea.sflag [#allocation4], %s937
        %s939 = sand.u32 %s125, 1
        %s940 = scalar_lea.vmem [#allocation7], %s939
        // Predicated region
        $region41: #{tpu_custom_call.1} parent=31 // pred_check
          %p941 = pneg %p135
        $region42: #{tpu_custom_call.1} parent=31 // pred_check_branch
          %943 = sbr.rel (%p941) target = $region44
        $region43: #{tpu_custom_call.1} parent=31 // pred_region
          %s945 = ssub.s32 16, 16
          %946 = vsyncadd %s938, %s945
          %s947 = smul.addr %s25, 2
          %s948 = sadd.s32 %s26, %s947
          %s949 = smul.addr %s948, 16
          %s950 = scalar_lea.hbm %s3, %s949
          %s952 = sshll.u32 %s940, 4
          %s953 = int_to_ptr.vmem [resolvable:$true] %s952
          %955 = dma.vmem_to_hbm [thread:$0]  %s953, 16, %s950, %s938
        $region44: #{tpu_custom_call.1} parent=31 // pred_fallthru
          _
      $region32: #{tpu_custom_call.1} parent=5 // pred_fallthru
        _
      %p956 = scmp.le.s32.totalorder 2, %s16
      // Predicated region
      $region45: #{tpu_custom_call.1} parent=5 // pred_check
        %p957 = pneg %p956
      $region46: #{tpu_custom_call.1} parent=5 // pred_check_branch
        %959 = sbr.rel (%p957) target = $region48
      $region47: #{tpu_custom_call.1} parent=5 // pred_region
        %s960 = ssub.s32 %s16, 2
        // Predicated region
        $region49: #{tpu_custom_call.1} parent=47 // pred_check
          %p961 = pneg %p141
        $region50: #{tpu_custom_call.1} parent=47 // pred_check_branch
          %963 = sbr.rel (%p961) target = $region52
        $region51: #{tpu_custom_call.1} parent=47 // pred_region
          %s964 = sand.u32 %s126, 1
          %s965 = scalar_lea.sflag [#allocation4], %s964
          %s966 = sand.u32 %s126, 1
          %s967 = scalar_lea.vmem [#allocation7], %s966
          %968 = dma.done %s965, 16
        $region52: #{tpu_custom_call.1} parent=47 // pred_fallthru
          _
      $region48: #{tpu_custom_call.1} parent=5 // pred_fallthru
        _
    $region6: #{tpu_custom_call.1} parent=1 // loop_footer
      %s20 = sadd.s32 1, %s16
    $region7: #{tpu_custom_call.1} parent=1 // loop_footer_branch
      %15 = sbr.rel target = $region3
    $region8: #{tpu_custom_call.1} parent=1 // loop_exit
      _
    %969 = vsyncpa [#allocation3], 1
    %s970 = scalar_lea.sflag [#allocation3], 1
    %971 = vsyncpa %s970, 1
    %972 = vsyncpa [#allocation6], 1
    %s973 = scalar_lea.sflag [#allocation6], 1
    %974 = vsyncpa %s973, 1
    %975 = vsyncpa [#allocation4], 1
    %s976 = scalar_lea.sflag [#allocation4], 1
    %977 = vsyncpa %s976, 1

// kernel: tpu_custom_call.1
$region0: #{tpu_custom_call.1}
  #allocation0 [shape = 'u32[]', space=smem, size = 0x4, offset = 0x4, fixed_abs, tag = 'smem constant byte address 0x4 - core index']
  #allocation1 [shape = 'u32[144,128]{1,0:T(1,128)}', space=vmem, size = 0x12000, scoped, tag = 'internal scratch']
  %s0 = inlined_call_operand.hbm [shape: f32[1,256,128], index: 0, kind: input, shape index: {}]
  %s1 = inlined_call_operand.hbm [shape: f32[1,256,128], index: 1, kind: input, shape index: {}]
  %s2 = inlined_call_operand.vmem [shape: f32[1,1,256], index: 2, kind: input, shape index: {}]
  %s3 = inlined_call_operand.hbm [shape: f32[1,1,256], index: 3, kind: output, shape index: {}]
  %s4 = sld [smem:[#allocation0]]
  $region53: #{tpu_custom_call.1} parent=0
    _
  %s6 = ssub.s32 1, %s4
  %s7 = scalar_select 0, %s6, %s4
  $region1: #{tpu_custom_call.1} parent=0
    #allocation2 [shape = 'u8[131072]{0}', space=vmem, size = 0x20000, scoped, tag = 'input window, operand 0, single buffered']
    #allocation3 [shape = 's32[2]{0}', space=sflag, size = 0x8, scoped, tag = 'scoped memory for tpu_custom_call.1']
    #allocation4 [shape = 's32[2]{0}', space=sflag, size = 0x8, scoped, tag = 'scoped memory for tpu_custom_call.1']
    #allocation5 [shape = 'u8[131072]{0}', space=vmem, size = 0x20000, scoped, tag = 'input window, operand 1']
    #allocation6 [shape = 's32[2]{0}', space=sflag, size = 0x8, scoped, tag = 'scoped memory for tpu_custom_call.1']
    #allocation7 [shape = 'u8[1024]{0}', space=vmem, size = 0x400, scoped, tag = 'output window, operand 0']
    %8 = vsyncpa [#allocation3], 0
    %9 = vsyncpa [#allocation6], 0
    %s10 = scalar_lea.sflag [#allocation6], 1
    %11 = vsyncpa %s10, 0
    %12 = vsyncpa [#allocation4], 0
    %s13 = scalar_lea.sflag [#allocation4], 1
    %14 = vsyncpa %s13, 0
    loop: start=0, step=1, limit=4
    $region2: #{tpu_custom_call.1} parent=1 // loop_pre_header
      _
    $region3: #{tpu_custom_call.1} parent=1 // loop_header
      %s16 = sphi 0, %s20
      %p17 = scmp.ge.s32.totalorder %s16, 4
      %s23 = sphi 0, %s35
      %s24 = sphi 0, %s31
      %s25 = sphi 0, %s23
      %s26 = sphi 0, %s24
      %s27 = sphi 0, %s25
      %s28 = sphi 0, %s26
      %s38 = sphi 0, %s40
      %s41 = sphi 0, %s38
      %s42 = sphi 0, %s41
      %s58 = sphi 0, %s42
      %s66 = sphi 0, %s68
      %s69 = sphi 0, %s66
      %s70 = sphi 0, %s69
      %s86 = sphi 0, %s70
      %s94 = sphi 0, %s96
      %s97 = sphi 0, %s94
      %s98 = sphi 0, %s97
      %s114 = sphi 0, %s98
      %s122 = sphi 0, %s124
      %s125 = sphi 0, %s122
      %s126 = sphi 0, %s125
      %s142 = sphi 0, %s126
    $region4: #{tpu_custom_call.1} parent=1 // loop_header_branch
      %19 = sbr.rel (%p17) target = $region8
    $region5: #{tpu_custom_call.1} parent=1 // loop_body
      %s21 = ssub.s32 %s16, 1
      %s22 = ssub.s32 %s16, 2
      %s29 = sadd.s32 1, %s24
      %p30 = scmp.ge.s32.totalorder %s29, 2
      %s31 = scalar_select %p30, 0, %s29
      %s32 = sadd.s32 1, %s23
      %s33 = scalar_select %p30, %s32, %s23
      %p34 = scmp.ge.s32.totalorder %s33, 1
      %s35 = scalar_select %p34, 0, %s33
      %s36 = ssub.s32 %s23, %s35
      %p37 = scmp.eq.s32.totalorder %s36, 0
      %s39 = sadd.s32 %s38, 1
      %s40 = scalar_select %p37, %s38, %s39
      %p43 = pneg %p37
      %p44 = scmp.eq.s32.totalorder %s16, 1
      %p45 = por %p43, %p44
      %p46 = scmp.ne.s32.totalorder %s38, %s41
      %p47 = scmp.eq.s32.totalorder %s16, 0
      %p48 = por %p46, %p47
      %p49 = scmp.ne.s32.totalorder %s38, %s41
      %p50 = scmp.eq.s32.totalorder %s21, 1
      %p51 = por %p49, %p50
      %p52 = scmp.ne.s32.totalorder %s41, %s42
      %p53 = scmp.eq.s32.totalorder %s21, 0
      %p54 = por %p52, %p53
      %p55 = scmp.ne.s32.totalorder %s41, %s42
      %p56 = scmp.eq.s32.totalorder %s22, 1
      %p57 = por %p55, %p56
      %p59 = scmp.ne.s32.totalorder %s42, %s58
      %p60 = scmp.eq.s32.totalorder %s22, 0
      %p61 = por %p59, %p60
      %s62 = ssub.s32 %s23, %s35
      %s63 = ssub.s32 %s24, %s31
      %s64 = sor.u32 %s62, %s63
      %p65 = scmp.eq.s32.totalorder %s64, 0
      %s67 = sadd.s32 %s66, 1
      %s68 = scalar_select %p65, %s66, %s67
      %p71 = pneg %p65
      %p72 = scmp.eq.s32.totalorder %s16, 1
      %p73 = por %p71, %p72
      %p74 = scmp.ne.s32.totalorder %s66, %s69
      %p75 = scmp.eq.s32.totalorder %s16, 0
      %p76 = por %p74, %p75
      %p77 = scmp.ne.s32.totalorder %s66, %s69
      %p78 = scmp.eq.s32.totalorder %s21, 1
      %p79 = por %p77, %p78
      %p80 = scmp.ne.s32.totalorder %s69, %s70
      %p81 = scmp.eq.s32.totalorder %s21, 0
      %p82 = por %p80, %p81
      %p83 = scmp.ne.s32.totalorder %s69, %s70
      %p84 = scmp.eq.s32.totalorder %s22, 1
      %p85 = por %p83, %p84
      %p87 = scmp.ne.s32.totalorder %s70, %s86
      %p88 = scmp.eq.s32.totalorder %s22, 0
      %p89 = por %p87, %p88
      %s90 = ssub.s32 %s23, %s35
      %s91 = ssub.s32 %s24, %s31
      %s92 = sor.u32 %s90, %s91
      %p93 = scmp.eq.s32.totalorder %s92, 0
      %s95 = sadd.s32 %s94, 1
      %s96 = scalar_select %p93, %s94, %s95
      %p99 = pneg %p93
      %p100 = scmp.eq.s32.totalorder %s16, 1
      %p101 = por %p99, %p100
      %p102 = scmp.ne.s32.totalorder %s94, %s97
      %p103 = scmp.eq.s32.totalorder %s16, 0
      %p104 = por %p102, %p103
      %p105 = scmp.ne.s32.totalorder %s94, %s97
      %p106 = scmp.eq.s32.totalorder %s21, 1
      %p107 = por %p105, %p106
      %p108 = scmp.ne.s32.totalorder %s97, %s98
      %p109 = scmp.eq.s32.totalorder %s21, 0
      %p110 = por %p108, %p109
      %p111 = scmp.ne.s32.totalorder %s97, %s98
      %p112 = scmp.eq.s32.totalorder %s22, 1
      %p113 = por %p111, %p112
      %p115 = scmp.ne.s32.totalorder %s98, %s114
      %p116 = scmp.eq.s32.totalorder %s22, 0
      %p117 = por %p115, %p116
      %s118 = ssub.s32 %s23, %s35
      %s119 = ssub.s32 %s24, %s31
      %s120 = sor.u32 %s118, %s119
      %p121 = scmp.eq.s32.totalorder %s120, 0
      %s123 = sadd.s32 %s122, 1
      %s124 = scalar_select %p121, %s122, %s123
      %p127 = pneg %p121
      %p128 = scmp.eq.s32.totalorder %s16, 1
      %p129 = por %p127, %p128
      %p130 = scmp.ne.s32.totalorder %s122, %s125
      %p131 = scmp.eq.s32.totalorder %s16, 0
      %p132 = por %p130, %p131
      %p133 = scmp.ne.s32.totalorder %s122, %s125
      %p134 = scmp.eq.s32.totalorder %s21, 1
      %p135 = por %p133, %p134
      %p136 = scmp.ne.s32.totalorder %s125, %s126
      %p137 = scmp.eq.s32.totalorder %s21, 0
      %p138 = por %p136, %p137
      %p139 = scmp.ne.s32.totalorder %s125, %s126
      %p140 = scmp.eq.s32.totalorder %s22, 1
      %p141 = por %p139, %p140
      %p143 = scmp.ne.s32.totalorder %s126, %s142
      %p144 = scmp.eq.s32.totalorder %s22, 0
      %p145 = por %p143, %p144
      %p146 = scmp.le.s32.totalorder 1, %s16
      %p147 = scmp.lt.s32.totalorder %s16, 3
      %p148 = pnand %p146, %p147
      %p149 = pneg %p148
      // Predicated region
      $region9: #{tpu_custom_call.1} parent=5 // pred_check
        _
      $region10: #{tpu_custom_call.1} parent=5 // pred_check_branch
        %151 = sbr.rel (%p148) target = $region12
      $region11: #{tpu_custom_call.1} parent=5 // pred_region
        %s152 = ssub.s32 %s16, 1
        // Predicated region
        $region13: #{tpu_custom_call.1} parent=11 // pred_check
          %p153 = pneg %p54
        $region14: #{tpu_custom_call.1} parent=11 // pred_check_branch
          %155 = sbr.rel (%p153) target = $region16
        $region15: #{tpu_custom_call.1} parent=11 // pred_region
          %s157 = ssub.s32 4096, 4096
          %158 = vsyncadd [#allocation3], %s157
          %s159 = smul.addr %s25, 32
          %s160 = smul.addr %s159, 128
          %s161 = scalar_lea.hbm %s0, %s160
          %s162 = sshll.u32 [#allocation2], 4
          %s163 = int_to_ptr.vmem [resolvable:$true] %s162
          %168 = dma.hbm_to_vmem [thread:$0]  %s161, 4096, %s163, [#allocation3], 128, 128, 8
        $region16: #{tpu_custom_call.1} parent=11 // pred_fallthru
          _
      $region12: #{tpu_custom_call.1} parent=5 // pred_fallthru
        _
      %p169 = scmp.lt.s32.totalorder %s16, 2
      // Predicated region
      $region17: #{tpu_custom_call.1} parent=5 // pred_check
        %p170 = pneg %p169
      $region18: #{tpu_custom_call.1} parent=5 // pred_check_branch
        %172 = sbr.rel (%p170) target = $region20
      $region19: #{tpu_custom_call.1} parent=5 // pred_region
        // Predicated region
        $region21: #{tpu_custom_call.1} parent=19 // pred_check
          %p173 = pneg %p76
        $region22: #{tpu_custom_call.1} parent=19 // pred_check_branch
          %175 = sbr.rel (%p173) target = $region24
        $region23: #{tpu_custom_call.1} parent=19 // pred_region
          %s176 = sand.u32 %s66, 1
          %s177 = scalar_lea.sflag [#allocation6], %s176
          %s178 = sand.u32 %s66, 1
          %s179 = smul.addr %s178, 128
          %s180 = scalar_lea.vmem [#allocation5], %s179
          %s181 = smul.u32 16, %s24
          %s183 = ssub.s32 2048, 2048
          %184 = vsyncadd %s177, %s183
          %s185 = smul.addr %s23, 32
          %s186 = sadd.s32 %s181, %s185
          %s187 = smul.addr %s186, 128
          %s188 = scalar_lea.hbm %s1, %s187
          %s189 = sshll.u32 %s180, 4
          %s190 = int_to_ptr.vmem [resolvable:$true] %s189
          %195 = dma.hbm_to_vmem [thread:$0]  %s188, 2048, %s190, %s177, 128, 128, 8
        $region24: #{tpu_custom_call.1} parent=19 // pred_fallthru
          _
        // Predicated region
        $region25: #{tpu_custom_call.1} parent=19 // pred_check
          %p196 = pneg %p104
        $region26: #{tpu_custom_call.1} parent=19 // pred_check_branch
          %198 = sbr.rel (%p196) target = $region28
        $region27: #{tpu_custom_call.1} parent=19 // pred_region
          %p199 = scmp.lt.s32.totalorder %s23, 0
          %s200 = scalar_select %p199, %s23, 0
          %p201 = scmp.lt.s32.totalorder %s24, 1
          %s202 = scalar_select %p201, %s24, 1
          %s203 = smul.addr %s200, 2
          %s204 = sadd.s32 %s202, %s203
          %s205 = scalar_lea.vmem %s2, %s204
        $region28: #{tpu_custom_call.1} parent=19 // pred_fallthru
          _
      $region20: #{tpu_custom_call.1} parent=5 // pred_fallthru
        _
      %p206 = scmp.le.s32.totalorder 1, %s16
      %p207 = scmp.lt.s32.totalorder %s16, 3
      %p208 = pnand %p206, %p207
      %p209 = pneg %p208
      // Predicated region
      $region29: #{tpu_custom_call.1} parent=5 // pred_check
        _
      $region30: #{tpu_custom_call.1} parent=5 // pred_check_branch
        %211 = sbr.rel (%p208) target = $region32
      $region31: #{tpu_custom_call.1} parent=5 // pred_region
        %s212 = ssub.s32 %s16, 1
        // Predicated region
        $region33: #{tpu_custom_call.1} parent=31 // pred_check
          %p213 = pneg %p54
        $region34: #{tpu_custom_call.1} parent=31 // pred_check_branch
          %215 = sbr.rel (%p213) target = $region36
        $region35: #{tpu_custom_call.1} parent=31 // pred_region
          %216 = dma.done [#allocation3], 4096
        $region36: #{tpu_custom_call.1} parent=31 // pred_fallthru
          _
        %s217 = sand.u32 %s69, 1
        %s218 = scalar_lea.sflag [#allocation6], %s217
        %s219 = sand.u32 %s69, 1
        %s220 = smul.addr %s219, 128
        %s221 = scalar_lea.vmem [#allocation5], %s220
        // Predicated region
        $region37: #{tpu_custom_call.1} parent=31 // pred_check
          %p222 = pneg %p82
        $region38: #{tpu_custom_call.1} parent=31 // pred_check_branch
          %224 = sbr.rel (%p222) target = $region40
        $region39: #{tpu_custom_call.1} parent=31 // pred_region
          %225 = dma.done %s218, 2048
        $region40: #{tpu_custom_call.1} parent=31 // pred_fallthru
          _
        %p226 = pneg %p54
        %p227 = pneg %p51
        %s228 = sand.u32 %s69, 1
        %s229 = scalar_lea.sflag [#allocation6], %s228
        %s230 = sand.u32 %s69, 1
        %s231 = smul.addr %s230, 128
        %s232 = scalar_lea.vmem [#allocation5], %s231
        %p233 = pneg %p82
        %p234 = pneg %p79
        %p235 = scmp.lt.s32.totalorder %s25, 0
        %s236 = scalar_select %p235, %s25, 0
        %p237 = scmp.lt.s32.totalorder %s26, 1
        %s238 = scalar_select %p237, %s26, 1
        %s239 = smul.addr %s236, 2
        %s240 = sadd.s32 %s238, %s239
        %s241 = scalar_lea.vmem %s2, %s240
        %p242 = pneg %p110
        %p243 = pneg %p107
        %p244 = pneg %p138
        %p245 = pneg %p135
        %s246 = sand.u32 %s125, 1
        %s247 = scalar_lea.sflag [#allocation4], %s246
        %s248 = sand.u32 %s125, 1
        %s249 = scalar_lea.vmem [#allocation7], %s248
        %s250 = smul.u32 16, %s26
        %p251 = scmp.lt.s32.totalorder %s25, 0
        %s252 = scalar_select %p251, %s25, 0
        %p253 = scmp.lt.s32.totalorder %s26, 1
        %s254 = scalar_select %p253, %s26, 1
        %s255 = smul.addr %s252, 2
        %s256 = sadd.s32 %s254, %s255
        %s257 = scalar_lea.vmem %s2, %s256
        %s258 = smul.u32 %s26, 128
        %v259 = vld [vmem:[#allocation2] sm:$0xff]
        %v260 = vld [vmem:[#allocation2 + $0x8] sm:$0xff]
        %v261 = vld [vmem:[#allocation2 + $0x10] sm:$0xff]
        %v262 = vld [vmem:[#allocation2 + $0x18] sm:$0xff]
        %v263 = vld [vmem:[#allocation2 + $0x20] sm:$0xff]
        %v264 = vld [vmem:[#allocation2 + $0x28] sm:$0xff]
        %v265 = vld [vmem:[#allocation2 + $0x30] sm:$0xff]
        %v266 = vld [vmem:[#allocation2 + $0x38] sm:$0xff]
        %v267 = vld [vmem:[#allocation2 + $0x40] sm:$0xff]
        %v268 = vld [vmem:[#allocation2 + $0x48] sm:$0xff]
        %v269 = vld [vmem:[#allocation2 + $0x50] sm:$0xff]
        %v270 = vld [vmem:[#allocation2 + $0x58] sm:$0xff]
        %v271 = vld [vmem:[#allocation2 + $0x60] sm:$0xff]
        %v272 = vld [vmem:[#allocation2 + $0x68] sm:$0xff]
        %v273 = vld [vmem:[#allocation2 + $0x70] sm:$0xff]
        %v274 = vld [vmem:[#allocation2 + $0x78] sm:$0xff]
        %v275 = vld [vmem:[#allocation2 + $0x80] sm:$0xff]
        %v276 = vld [vmem:[#allocation2 + $0x88] sm:$0xff]
        %v277 = vld [vmem:[#allocation2 + $0x90] sm:$0xff]
        %v278 = vld [vmem:[#allocation2 + $0x98] sm:$0xff]
        %v279 = vld [vmem:[#allocation2 + $0xa0] sm:$0xff]
        %v280 = vld [vmem:[#allocation2 + $0xa8] sm:$0xff]
        %v281 = vld [vmem:[#allocation2 + $0xb0] sm:$0xff]
        %v282 = vld [vmem:[#allocation2 + $0xb8] sm:$0xff]
        %v283 = vld [vmem:[#allocation2 + $0xc0] sm:$0xff]
        %v284 = vld [vmem:[#allocation2 + $0xc8] sm:$0xff]
        %v285 = vld [vmem:[#allocation2 + $0xd0] sm:$0xff]
        %v286 = vld [vmem:[#allocation2 + $0xd8] sm:$0xff]
        %v287 = vld [vmem:[#allocation2 + $0xe0] sm:$0xff]
        %v288 = vld [vmem:[#allocation2 + $0xe8] sm:$0xff]
        %v289 = vld [vmem:[#allocation2 + $0xf0] sm:$0xff]
        %v290 = vld [vmem:[#allocation2 + $0xf8] sm:$0xff]
        %v291 = vld [vmem:[%s221] sm:$0xff]
        %v292 = vld [vmem:[%s221 + $0x8] sm:$0xff]
        %v293 = vld [vmem:[%s221 + $0x10] sm:$0xff]
        %v294 = vld [vmem:[%s221 + $0x18] sm:$0xff]
        %v295 = vld [vmem:[%s221 + $0x20] sm:$0xff]
        %v296 = vld [vmem:[%s221 + $0x28] sm:$0xff]
        %v297 = vld [vmem:[%s221 + $0x30] sm:$0xff]
        %v298 = vld [vmem:[%s221 + $0x38] sm:$0xff]
        %v299 = vld [vmem:[%s221 + $0x40] sm:$0xff]
        %v300 = vld [vmem:[%s221 + $0x48] sm:$0xff]
        %v301 = vld [vmem:[%s221 + $0x50] sm:$0xff]
        %v302 = vld [vmem:[%s221 + $0x58] sm:$0xff]
        %v303 = vld [vmem:[%s221 + $0x60] sm:$0xff]
        %v304 = vld [vmem:[%s221 + $0x68] sm:$0xff]
        %v305 = vld [vmem:[%s221 + $0x70] sm:$0xff]
        %v306 = vld [vmem:[%s221 + $0x78] sm:$0xff]
        %307 = vmatprep.subr.mxu0 0.0
        %308 = vmatpush1.xpose.msra.mxu0 %v306
        %309 = vmatprep.subr.mxu0 0.0
        %310 = vmatpush1.xpose.msra.mxu0 %v305
        %311 = vmatprep.subr.mxu0 0.0
        %312 = vmatpush1.xpose.msra.mxu0 %v304
        %313 = vmatprep.subr.mxu0 0.0
        %314 = vmatpush1.xpose.msra.mxu0 %v303
        %315 = vmatprep.subr.mxu0 0.0
        %316 = vmatpush1.xpose.msra.mxu0 %v302
        %317 = vmatprep.subr.mxu0 0.0
        %318 = vmatpush1.xpose.msra.mxu0 %v301
        %319 = vmatprep.subr.mxu0 0.0
        %320 = vmatpush1.xpose.msra.mxu0 %v300
        %321 = vmatprep.subr.mxu0 0.0
        %322 = vmatpush1.xpose.msra.mxu0 %v299
        %323 = vmatprep.subr.mxu0 0.0
        %324 = vmatpush1.xpose.msra.mxu0 %v298
        %325 = vmatprep.subr.mxu0 0.0
        %326 = vmatpush1.xpose.msra.mxu0 %v297
        %327 = vmatprep.subr.mxu0 0.0
        %328 = vmatpush1.xpose.msra.mxu0 %v296
        %329 = vmatprep.subr.mxu0 0.0
        %330 = vmatpush1.xpose.msra.mxu0 %v295
        %331 = vmatprep.subr.mxu0 0.0
        %332 = vmatpush1.xpose.msra.mxu0 %v294
        %333 = vmatprep.subr.mxu0 0.0
        %334 = vmatpush1.xpose.msra.mxu0 %v293
        %335 = vmatprep.subr.mxu0 0.0
        %336 = vmatpush1.xpose.msra.mxu0 %v292
        %337 = vmatprep.subr.mxu0 0.0
        %338 = vmatpush1.xpose.msra.mxu0 %v291
        %339 = vmatprep.subr.mxu0 0.0
        %340 = vmatpush2.xpose.msra.mxu0 0.0
        %341 = vmatprep.subr.mxu0 0.0
        %342 = vmatpush2.xpose.msra.mxu0 0.0
        %343 = vmatprep.subr.mxu0 0.0
        %344 = vmatpush2.xpose.msra.mxu0 0.0
        %345 = vmatprep.subr.mxu0 0.0
        %346 = vmatpush2.xpose.msra.mxu0 0.0
        %347 = vmatprep.subr.mxu0 0.0
        %348 = vmatpush2.xpose.msra.mxu0 0.0
        %349 = vmatprep.subr.mxu0 0.0
        %350 = vmatpush2.xpose.msra.mxu0 0.0
        %351 = vmatprep.subr.mxu0 0.0
        %352 = vmatpush2.xpose.msra.mxu0 0.0
        %353 = vmatprep.subr.mxu0 0.0
        %354 = vmatpush2.xpose.msra.mxu0 0.0
        %355 = vmatprep.subr.mxu0 0.0
        %356 = vmatpush2.xpose.msra.mxu0 0.0
        %357 = vmatprep.subr.mxu0 0.0
        %358 = vmatpush2.xpose.msra.mxu0 0.0
        %359 = vmatprep.subr.mxu0 0.0
        %360 = vmatpush2.xpose.msra.mxu0 0.0
        %361 = vmatprep.subr.mxu0 0.0
        %362 = vmatpush2.xpose.msra.mxu0 0.0
        %363 = vmatprep.subr.mxu0 0.0
        %364 = vmatpush2.xpose.msra.mxu0 0.0
        %365 = vmatprep.subr.mxu0 0.0
        %366 = vmatpush2.xpose.msra.mxu0 0.0
        %367 = vmatprep.subr.mxu0 0.0
        %368 = vmatpush2.xpose.msra.mxu0 0.0
        %369 = vmatprep.subr.mxu0 0.0
        %370 = vmatpush2.xpose.msra.mxu0 0.0
        %371 = vmatprep.mubr.f32.mxu0 0.0
        %372 = vmatmul.mubr.f32.gmra.mxu0 %v259
        %v373 = vpop.f32.mrf.mxu0
        %v374 = vadd.f32 0.0, %v373
        %v375 = vpop.f32.mrf.mxu0
        %376 = vmatprep.mubr.f32.mxu0 0.0
        %377 = vmatmul.mubr.f32.gmra.mxu0 %v260
        %v378 = vpop.f32.mrf.mxu0
        %v379 = vadd.f32 0.0, %v378
        %v380 = vpop.f32.mrf.mxu0
        %381 = vmatprep.mubr.f32.mxu0 0.0
        %382 = vmatmul.mubr.f32.gmra.mxu0 %v261
        %v383 = vpop.f32.mrf.mxu0
        %v384 = vadd.f32 0.0, %v383
        %v385 = vpop.f32.mrf.mxu0
        %386 = vmatprep.mubr.f32.mxu0 0.0
        %387 = vmatmul.mubr.f32.gmra.mxu0 %v262
        %v388 = vpop.f32.mrf.mxu0
        %v389 = vadd.f32 0.0, %v388
        %v390 = vpop.f32.mrf.mxu0
        %391 = vmatprep.mubr.f32.mxu0 0.0
        %392 = vmatmul.mubr.f32.gmra.mxu0 %v263
        %v393 = vpop.f32.mrf.mxu0
        %v394 = vadd.f32 0.0, %v393
        %v395 = vpop.f32.mrf.mxu0
        %396 = vmatprep.mubr.f32.mxu0 0.0
        %397 = vmatmul.mubr.f32.gmra.mxu0 %v264
        %v398 = vpop.f32.mrf.mxu0
        %v399 = vadd.f32 0.0, %v398
        %v400 = vpop.f32.mrf.mxu0
        %401 = vmatprep.mubr.f32.mxu0 0.0
        %402 = vmatmul.mubr.f32.gmra.mxu0 %v265
        %v403 = vpop.f32.mrf.mxu0
        %v404 = vadd.f32 0.0, %v403
        %v405 = vpop.f32.mrf.mxu0
        %406 = vmatprep.mubr.f32.mxu0 0.0
        %407 = vmatmul.mubr.f32.gmra.mxu0 %v266
        %v408 = vpop.f32.mrf.mxu0
        %v409 = vadd.f32 0.0, %v408
        %v410 = vpop.f32.mrf.mxu0
        %411 = vmatprep.mubr.f32.mxu0 0.0
        %412 = vmatmul.mubr.f32.gmra.mxu0 %v267
        %v413 = vpop.f32.mrf.mxu0
        %v414 = vadd.f32 0.0, %v413
        %v415 = vpop.f32.mrf.mxu0
        %416 = vmatprep.mubr.f32.mxu0 0.0
        %417 = vmatmul.mubr.f32.gmra.mxu0 %v268
        %v418 = vpop.f32.mrf.mxu0
        %v419 = vadd.f32 0.0, %v418
        %v420 = vpop.f32.mrf.mxu0
        %421 = vmatprep.mubr.f32.mxu0 0.0
        %422 = vmatmul.mubr.f32.gmra.mxu0 %v269
        %v423 = vpop.f32.mrf.mxu0
        %v424 = vadd.f32 0.0, %v423
        %v425 = vpop.f32.mrf.mxu0
        %426 = vmatprep.mubr.f32.mxu0 0.0
        %427 = vmatmul.mubr.f32.gmra.mxu0 %v270
        %v428 = vpop.f32.mrf.mxu0
        %v429 = vadd.f32 0.0, %v428
        %v430 = vpop.f32.mrf.mxu0
        %431 = vmatprep.mubr.f32.mxu0 0.0
        %432 = vmatmul.mubr.f32.gmra.mxu0 %v271
        %v433 = vpop.f32.mrf.mxu0
        %v434 = vadd.f32 0.0, %v433
        %v435 = vpop.f32.mrf.mxu0
        %436 = vmatprep.mubr.f32.mxu0 0.0
        %437 = vmatmul.mubr.f32.gmra.mxu0 %v272
        %v438 = vpop.f32.mrf.mxu0
        %v439 = vadd.f32 0.0, %v438
        %v440 = vpop.f32.mrf.mxu0
        %441 = vmatprep.mubr.f32.mxu0 0.0
        %442 = vmatmul.mubr.f32.gmra.mxu0 %v273
        %v443 = vpop.f32.mrf.mxu0
        %v444 = vadd.f32 0.0, %v443
        %v445 = vpop.f32.mrf.mxu0
        %446 = vmatprep.mubr.f32.mxu0 0.0
        %447 = vmatmul.mubr.f32.gmra.mxu0 %v274
        %v448 = vpop.f32.mrf.mxu0
        %v449 = vadd.f32 0.0, %v448
        %v450 = vpop.f32.mrf.mxu0
        %451 = vmatprep.mubr.f32.mxu0 0.0
        %452 = vmatmul.mubr.f32.gmra.mxu0 %v275
        %v453 = vpop.f32.mrf.mxu0
        %v454 = vadd.f32 0.0, %v453
        %v455 = vpop.f32.mrf.mxu0
        %456 = vmatprep.mubr.f32.mxu0 0.0
        %457 = vmatmul.mubr.f32.gmra.mxu0 %v276
        %v458 = vpop.f32.mrf.mxu0
        %v459 = vadd.f32 0.0, %v458
        %v460 = vpop.f32.mrf.mxu0
        %461 = vmatprep.mubr.f32.mxu0 0.0
        %462 = vmatmul.mubr.f32.gmra.mxu0 %v277
        %v463 = vpop.f32.mrf.mxu0
        %v464 = vadd.f32 0.0, %v463
        %v465 = vpop.f32.mrf.mxu0
        %466 = vmatprep.mubr.f32.mxu0 0.0
        %467 = vmatmul.mubr.f32.gmra.mxu0 %v278
        %v468 = vpop.f32.mrf.mxu0
        %v469 = vadd.f32 0.0, %v468
        %v470 = vpop.f32.mrf.mxu0
        %471 = vmatprep.mubr.f32.mxu0 0.0
        %472 = vmatmul.mubr.f32.gmra.mxu0 %v279
        %v473 = vpop.f32.mrf.mxu0
        %v474 = vadd.f32 0.0, %v473
        %v475 = vpop.f32.mrf.mxu0
        %476 = vmatprep.mubr.f32.mxu0 0.0
        %477 = vmatmul.mubr.f32.gmra.mxu0 %v280
        %v478 = vpop.f32.mrf.mxu0
        %v479 = vadd.f32 0.0, %v478
        %v480 = vpop.f32.mrf.mxu0
        %481 = vmatprep.mubr.f32.mxu0 0.0
        %482 = vmatmul.mubr.f32.gmra.mxu0 %v281
        %v483 = vpop.f32.mrf.mxu0
        %v484 = vadd.f32 0.0, %v483
        %v485 = vpop.f32.mrf.mxu0
        %486 = vmatprep.mubr.f32.mxu0 0.0
        %487 = vmatmul.mubr.f32.gmra.mxu0 %v282
        %v488 = vpop.f32.mrf.mxu0
        %v489 = vadd.f32 0.0, %v488
        %v490 = vpop.f32.mrf.mxu0
        %491 = vmatprep.mubr.f32.mxu0 0.0
        %492 = vmatmul.mubr.f32.gmra.mxu0 %v283
        %v493 = vpop.f32.mrf.mxu0
        %v494 = vadd.f32 0.0, %v493
        %v495 = vpop.f32.mrf.mxu0
        %496 = vmatprep.mubr.f32.mxu0 0.0
        %497 = vmatmul.mubr.f32.gmra.mxu0 %v284
        %v498 = vpop.f32.mrf.mxu0
        %v499 = vadd.f32 0.0, %v498
        %v500 = vpop.f32.mrf.mxu0
        %501 = vmatprep.mubr.f32.mxu0 0.0
        %502 = vmatmul.mubr.f32.gmra.mxu0 %v285
        %v503 = vpop.f32.mrf.mxu0
        %v504 = vadd.f32 0.0, %v503
        %v505 = vpop.f32.mrf.mxu0
        %506 = vmatprep.mubr.f32.mxu0 0.0
        %507 = vmatmul.mubr.f32.gmra.mxu0 %v286
        %v508 = vpop.f32.mrf.mxu0
        %v509 = vadd.f32 0.0, %v508
        %v510 = vpop.f32.mrf.mxu0
        %511 = vmatprep.mubr.f32.mxu0 0.0
        %512 = vmatmul.mubr.f32.gmra.mxu0 %v287
        %v513 = vpop.f32.mrf.mxu0
        %v514 = vadd.f32 0.0, %v513
        %v515 = vpop.f32.mrf.mxu0
        %516 = vmatprep.mubr.f32.mxu0 0.0
        %517 = vmatmul.mubr.f32.gmra.mxu0 %v288
        %v518 = vpop.f32.mrf.mxu0
        %v519 = vadd.f32 0.0, %v518
        %v520 = vpop.f32.mrf.mxu0
        %521 = vmatprep.mubr.f32.mxu0 0.0
        %522 = vmatmul.mubr.f32.gmra.mxu0 %v289
        %v523 = vpop.f32.mrf.mxu0
        %v524 = vadd.f32 0.0, %v523
        %v525 = vpop.f32.mrf.mxu0
        %526 = vmatprep.mubr.f32.mxu0 0.0
        %527 = vmatmul.mubr.f32.gmra.mxu0 %v290
        %v528 = vpop.f32.mrf.mxu0
        %v529 = vadd.f32 0.0, %v528
        %v530 = vpop.f32.mrf.mxu0
        %531 = vdwg.mxu0
        %v532 = vlaneseq
        %v533 = vshrl.u32 %v532, 7
        %v534 = vadd.s32 %v533, 8
        %v535 = vadd.s32 %v533, 16
        %v536 = vadd.s32 %v533, 24
        %v537 = vadd.s32 %v533, 32
        %v538 = vadd.s32 %v533, 40
        %v539 = vadd.s32 %v533, 48
        %v540 = vadd.s32 %v533, 56
        %v541 = vadd.s32 %v533, 64
        %v542 = vadd.s32 %v533, 72
        %v543 = vadd.s32 %v533, 80
        %v544 = vadd.s32 %v533, 88
        %v545 = vadd.s32 %v533, 96
        %v546 = vadd.s32 %v533, 104
        %v547 = vadd.s32 %v533, 112
        %v548 = vadd.s32 %v533, 120
        %v549 = vadd.s32 %v533, 128
        %v550 = vadd.s32 %v533, 136
        %v551 = vadd.s32 %v533, 144
        %v552 = vadd.s32 %v533, 152
        %v553 = vadd.s32 %v533, 160
        %v554 = vadd.s32 %v533, 168
        %v555 = vadd.s32 %v533, 176
        %v556 = vadd.s32 %v533, 184
        %v557 = vadd.s32 %v533, 192
        %v558 = vadd.s32 %v533, 200
        %v559 = vadd.s32 %v533, 208
        %v560 = vadd.s32 %v533, 216
        %v561 = vadd.s32 %v533, 224
        %v562 = vadd.s32 %v533, 232
        %v563 = vadd.s32 %v533, 240
        %v564 = vadd.s32 %v533, 248
        %v565 = vlaneseq
        %v566 = vand.u32 %v565, 127
        %v567 = vstv %s258
        %v568 = vadd.s32 %v566, %v567
        %vm569 = vcmp.eq.s32.totalorder %v533, %v568
        %vm570 = vcmp.eq.s32.totalorder %v534, %v568
        %vm571 = vcmp.eq.s32.totalorder %v535, %v568
        %vm572 = vcmp.eq.s32.totalorder %v536, %v568
        %vm573 = vcmp.eq.s32.totalorder %v537, %v568
        %vm574 = vcmp.eq.s32.totalorder %v538, %v568
        %vm575 = vcmp.eq.s32.totalorder %v539, %v568
        %vm576 = vcmp.eq.s32.totalorder %v540, %v568
        %vm577 = vcmp.eq.s32.totalorder %v541, %v568
        %vm578 = vcmp.eq.s32.totalorder %v542, %v568
        %vm579 = vcmp.eq.s32.totalorder %v543, %v568
        %vm580 = vcmp.eq.s32.totalorder %v544, %v568
        %vm581 = vcmp.eq.s32.totalorder %v545, %v568
        %vm582 = vcmp.eq.s32.totalorder %v546, %v568
        %vm583 = vcmp.eq.s32.totalorder %v547, %v568
        %vm584 = vcmp.eq.s32.totalorder %v548, %v568
        %vm585 = vcmp.eq.s32.totalorder %v549, %v568
        %vm586 = vcmp.eq.s32.totalorder %v550, %v568
        %vm587 = vcmp.eq.s32.totalorder %v551, %v568
        %vm588 = vcmp.eq.s32.totalorder %v552, %v568
        %vm589 = vcmp.eq.s32.totalorder %v553, %v568
        %vm590 = vcmp.eq.s32.totalorder %v554, %v568
        %vm591 = vcmp.eq.s32.totalorder %v555, %v568
        %vm592 = vcmp.eq.s32.totalorder %v556, %v568
        %vm593 = vcmp.eq.s32.totalorder %v557, %v568
        %vm594 = vcmp.eq.s32.totalorder %v558, %v568
        %vm595 = vcmp.eq.s32.totalorder %v559, %v568
        %vm596 = vcmp.eq.s32.totalorder %v560, %v568
        %vm597 = vcmp.eq.s32.totalorder %v561, %v568
        %vm598 = vcmp.eq.s32.totalorder %v562, %v568
        %vm599 = vcmp.eq.s32.totalorder %v563, %v568
        %vm600 = vcmp.eq.s32.totalorder %v564, %v568
        %vm601 = vcmp.ge.s32.totalorder %v533, 256
        %vm602 = vcmp.ge.s32.totalorder %v534, 256
        %vm603 = vcmp.ge.s32.totalorder %v535, 256
        %vm604 = vcmp.ge.s32.totalorder %v536, 256
        %vm605 = vcmp.ge.s32.totalorder %v537, 256
        %vm606 = vcmp.ge.s32.totalorder %v538, 256
        %vm607 = vcmp.ge.s32.totalorder %v539, 256
        %vm608 = vcmp.ge.s32.totalorder %v540, 256
        %vm609 = vcmp.ge.s32.totalorder %v541, 256
        %vm610 = vcmp.ge.s32.totalorder %v542, 256
        %vm611 = vcmp.ge.s32.totalorder %v543, 256
        %vm612 = vcmp.ge.s32.totalorder %v544, 256
        %vm613 = vcmp.ge.s32.totalorder %v545, 256
        %vm614 = vcmp.ge.s32.totalorder %v546, 256
        %vm615 = vcmp.ge.s32.totalorder %v547, 256
        %vm616 = vcmp.ge.s32.totalorder %v548, 256
        %vm617 = vcmp.ge.s32.totalorder %v549, 256
        %vm618 = vcmp.ge.s32.totalorder %v550, 256
        %vm619 = vcmp.ge.s32.totalorder %v551, 256
        %vm620 = vcmp.ge.s32.totalorder %v552, 256
        %vm621 = vcmp.ge.s32.totalorder %v553, 256
        %vm622 = vcmp.ge.s32.totalorder %v554, 256
        %vm623 = vcmp.ge.s32.totalorder %v555, 256
        %vm624 = vcmp.ge.s32.totalorder %v556, 256
        %vm625 = vcmp.ge.s32.totalorder %v557, 256
        %vm626 = vcmp.ge.s32.totalorder %v558, 256
        %vm627 = vcmp.ge.s32.totalorder %v559, 256
        %vm628 = vcmp.ge.s32.totalorder %v560, 256
        %vm629 = vcmp.ge.s32.totalorder %v561, 256
        %vm630 = vcmp.ge.s32.totalorder %v562, 256
        %vm631 = vcmp.ge.s32.totalorder %v563, 256
        %vm632 = vcmp.ge.s32.totalorder %v564, 256
        %v633 = vsel %vm601, 1, 0
        %v634 = vsel %vm602, 1, 0
        %v635 = vsel %vm603, 1, 0
        %v636 = vsel %vm604, 1, 0
        %v637 = vsel %vm605, 1, 0
        %v638 = vsel %vm606, 1, 0
        %v639 = vsel %vm607, 1, 0
        %v640 = vsel %vm608, 1, 0
        %v641 = vsel %vm609, 1, 0
        %v642 = vsel %vm610, 1, 0
        %v643 = vsel %vm611, 1, 0
        %v644 = vsel %vm612, 1, 0
        %v645 = vsel %vm613, 1, 0
        %v646 = vsel %vm614, 1, 0
        %v647 = vsel %vm615, 1, 0
        %v648 = vsel %vm616, 1, 0
        %v649 = vsel %vm617, 1, 0
        %v650 = vsel %vm618, 1, 0
        %v651 = vsel %vm619, 1, 0
        %v652 = vsel %vm620, 1, 0
        %v653 = vsel %vm621, 1, 0
        %v654 = vsel %vm622, 1, 0
        %v655 = vsel %vm623, 1, 0
        %v656 = vsel %vm624, 1, 0
        %v657 = vsel %vm625, 1, 0
        %v658 = vsel %vm626, 1, 0
        %v659 = vsel %vm627, 1, 0
        %v660 = vsel %vm628, 1, 0
        %v661 = vsel %vm629, 1, 0
        %v662 = vsel %vm630, 1, 0
        %v663 = vsel %vm631, 1, 0
        %v664 = vsel %vm632, 1, 0
        %vm665 = vcmp.eq.s32.totalorder %v633, 1
        %vm666 = vcmp.eq.s32.totalorder %v634, 1
        %vm667 = vcmp.eq.s32.totalorder %v635, 1
        %vm668 = vcmp.eq.s32.totalorder %v636, 1
        %vm669 = vcmp.eq.s32.totalorder %v637, 1
        %vm670 = vcmp.eq.s32.totalorder %v638, 1
        %vm671 = vcmp.eq.s32.totalorder %v639, 1
        %vm672 = vcmp.eq.s32.totalorder %v640, 1
        %vm673 = vcmp.eq.s32.totalorder %v641, 1
        %vm674 = vcmp.eq.s32.totalorder %v642, 1
        %vm675 = vcmp.eq.s32.totalorder %v643, 1
        %vm676 = vcmp.eq.s32.totalorder %v644, 1
        %vm677 = vcmp.eq.s32.totalorder %v645, 1
        %vm678 = vcmp.eq.s32.totalorder %v646, 1
        %vm679 = vcmp.eq.s32.totalorder %v647, 1
        %vm680 = vcmp.eq.s32.totalorder %v648, 1
        %vm681 = vcmp.eq.s32.totalorder %v649, 1
        %vm682 = vcmp.eq.s32.totalorder %v650, 1
        %vm683 = vcmp.eq.s32.totalorder %v651, 1
        %vm684 = vcmp.eq.s32.totalorder %v652, 1
        %vm685 = vcmp.eq.s32.totalorder %v653, 1
        %vm686 = vcmp.eq.s32.totalorder %v654, 1
        %vm687 = vcmp.eq.s32.totalorder %v655, 1
        %vm688 = vcmp.eq.s32.totalorder %v656, 1
        %vm689 = vcmp.eq.s32.totalorder %v657, 1
        %vm690 = vcmp.eq.s32.totalorder %v658, 1
        %vm691 = vcmp.eq.s32.totalorder %v659, 1
        %vm692 = vcmp.eq.s32.totalorder %v660, 1
        %vm693 = vcmp.eq.s32.totalorder %v661, 1
        %vm694 = vcmp.eq.s32.totalorder %v662, 1
        %vm695 = vcmp.eq.s32.totalorder %v663, 1
        %vm696 = vcmp.eq.s32.totalorder %v664, 1
        %vm697 = vmor %vm569, %vm665
        %vm698 = vmor %vm570, %vm666
        %vm699 = vmor %vm571, %vm667
        %vm700 = vmor %vm572, %vm668
        %vm701 = vmor %vm573, %vm669
        %vm702 = vmor %vm574, %vm670
        %vm703 = vmor %vm575, %vm671
        %vm704 = vmor %vm576, %vm672
        %vm705 = vmor %vm577, %vm673
        %vm706 = vmor %vm578, %vm674
        %vm707 = vmor %vm579, %vm675
        %vm708 = vmor %vm580, %vm676
        %vm709 = vmor %vm581, %vm677
        %vm710 = vmor %vm582, %vm678
        %vm711 = vmor %vm583, %vm679
        %vm712 = vmor %vm584, %vm680
        %vm713 = vmor %vm585, %vm681
        %vm714 = vmor %vm586, %vm682
        %vm715 = vmor %vm587, %vm683
        %vm716 = vmor %vm588, %vm684
        %vm717 = vmor %vm589, %vm685
        %vm718 = vmor %vm590, %vm686
        %vm719 = vmor %vm591, %vm687
        %vm720 = vmor %vm592, %vm688
        %vm721 = vmor %vm593, %vm689
        %vm722 = vmor %vm594, %vm690
        %vm723 = vmor %vm595, %vm691
        %vm724 = vmor %vm596, %vm692
        %vm725 = vmor %vm597, %vm693
        %vm726 = vmor %vm598, %vm694
        %vm727 = vmor %vm599, %vm695
        %vm728 = vmor %vm600, %vm696
        %v729 = vsel %vm697, -1e+30, %v374
        %v730 = vsel %vm698, -1e+30, %v379
        %v731 = vsel %vm699, -1e+30, %v384
        %v732 = vsel %vm700, -1e+30, %v389
        %v733 = vsel %vm701, -1e+30, %v394
        %v734 = vsel %vm702, -1e+30, %v399
        %v735 = vsel %vm703, -1e+30, %v404
        %v736 = vsel %vm704, -1e+30, %v409
        %v737 = vsel %vm705, -1e+30, %v414
        %v738 = vsel %vm706, -1e+30, %v419
        %v739 = vsel %vm707, -1e+30, %v424
        %v740 = vsel %vm708, -1e+30, %v429
        %v741 = vsel %vm709, -1e+30, %v434
        %v742 = vsel %vm710, -1e+30, %v439
        %v743 = vsel %vm711, -1e+30, %v444
        %v744 = vsel %vm712, -1e+30, %v449
        %v745 = vsel %vm713, -1e+30, %v454
        %v746 = vsel %vm714, -1e+30, %v459
        %v747 = vsel %vm715, -1e+30, %v464
        %v748 = vsel %vm716, -1e+30, %v469
        %v749 = vsel %vm717, -1e+30, %v474
        %v750 = vsel %vm718, -1e+30, %v479
        %v751 = vsel %vm719, -1e+30, %v484
        %v752 = vsel %vm720, -1e+30, %v489
        %v753 = vsel %vm721, -1e+30, %v494
        %v754 = vsel %vm722, -1e+30, %v499
        %v755 = vsel %vm723, -1e+30, %v504
        %v756 = vsel %vm724, -1e+30, %v509
        %v757 = vsel %vm725, -1e+30, %v514
        %v758 = vsel %vm726, -1e+30, %v519
        %v759 = vsel %vm727, -1e+30, %v524
        %v760 = vsel %vm728, -1e+30, %v529
        %v761 = vmax.f32 %v729, %v733
        %v762 = vmax.f32 %v730, %v734
        %v763 = vmax.f32 %v731, %v735
        %v764 = vmax.f32 %v732, %v736
        %v765 = vmax.f32 %v761, %v737
        %v766 = vmax.f32 %v762, %v738
        %v767 = vmax.f32 %v763, %v739
        %v768 = vmax.f32 %v764, %v740
        %v769 = vmax.f32 %v765, %v741
        %v770 = vmax.f32 %v766, %v742
        %v771 = vmax.f32 %v767, %v743
        %v772 = vmax.f32 %v768, %v744
        %v773 = vmax.f32 %v769, %v745
        %v774 = vmax.f32 %v770, %v746
        %v775 = vmax.f32 %v771, %v747
        %v776 = vmax.f32 %v772, %v748
        %v777 = vmax.f32 %v773, %v749
        %v778 = vmax.f32 %v774, %v750
        %v779 = vmax.f32 %v775, %v751
        %v780 = vmax.f32 %v776, %v752
        %v781 = vmax.f32 %v777, %v753
        %v782 = vmax.f32 %v778, %v754
        %v783 = vmax.f32 %v779, %v755
        %v784 = vmax.f32 %v780, %v756
        %v785 = vmax.f32 %v781, %v757
        %v786 = vmax.f32 %v782, %v758
        %v787 = vmax.f32 %v783, %v759
        %v788 = vmax.f32 %v784, %v760
        %v789 = vmax.f32 %v785, %v786
        %v790 = vmax.f32 %v787, %v788
        %v791 = vmax.f32 %v789, %v790
        %v792 = vrot.slane %v791, 4
        %v793 = vmax.f32 %v791, %v792
        %v794 = vrot.slane %v793, 2
        %v795 = vmax.f32 %v793, %v794
        %v796 = vrot.slane %v795, 1
        %v797 = vmax.f32 %v795, %v796
        %v798 = vsub.f32 %v729, %v797
        %v799 = vsub.f32 %v730, %v797
        %v800 = vsub.f32 %v731, %v797
        %v801 = vsub.f32 %v732, %v797
        %v802 = vsub.f32 %v733, %v797
        %v803 = vsub.f32 %v734, %v797
        %v804 = vsub.f32 %v735, %v797
        %v805 = vsub.f32 %v736, %v797
        %v806 = vsub.f32 %v737, %v797
        %v807 = vsub.f32 %v738, %v797
        %v808 = vsub.f32 %v739, %v797
        %v809 = vsub.f32 %v740, %v797
        %v810 = vsub.f32 %v741, %v797
        %v811 = vsub.f32 %v742, %v797
        %v812 = vsub.f32 %v743, %v797
        %v813 = vsub.f32 %v744, %v797
        %v814 = vsub.f32 %v745, %v797
        %v815 = vsub.f32 %v746, %v797
        %v816 = vsub.f32 %v747, %v797
        %v817 = vsub.f32 %v748, %v797
        %v818 = vsub.f32 %v749, %v797
        %v819 = vsub.f32 %v750, %v797
        %v820 = vsub.f32 %v751, %v797
        %v821 = vsub.f32 %v752, %v797
        %v822 = vsub.f32 %v753, %v797
        %v823 = vsub.f32 %v754, %v797
        %v824 = vsub.f32 %v755, %v797
        %v825 = vsub.f32 %v756, %v797
        %v826 = vsub.f32 %v757, %v797
        %v827 = vsub.f32 %v758, %v797
        %v828 = vsub.f32 %v759, %v797
        %v829 = vsub.f32 %v760, %v797
        %v830 = vmul.f32 %v798, 1.442695
        %v831 = vpow.pop %v830
        %v832 = vmul.f32 %v799, 1.442695
        %v833 = vpow.pop %v832
        %v834 = vmul.f32 %v800, 1.442695
        %v835 = vpow.pop %v834
        %v836 = vmul.f32 %v801, 1.442695
        %v837 = vpow.pop %v836
        %v838 = vmul.f32 %v802, 1.442695
        %v839 = vpow.pop %v838
        %v840 = vmul.f32 %v803, 1.442695
        %v841 = vpow.pop %v840
        %v842 = vmul.f32 %v804, 1.442695
        %v843 = vpow.pop %v842
        %v844 = vmul.f32 %v805, 1.442695
        %v845 = vpow.pop %v844
        %v846 = vmul.f32 %v806, 1.442695
        %v847 = vpow.pop %v846
        %v848 = vmul.f32 %v807, 1.442695
        %v849 = vpow.pop %v848
        %v850 = vmul.f32 %v808, 1.442695
        %v851 = vpow.pop %v850
        %v852 = vmul.f32 %v809, 1.442695
        %v853 = vpow.pop %v852
        %v854 = vmul.f32 %v810, 1.442695
        %v855 = vpow.pop %v854
        %v856 = vmul.f32 %v811, 1.442695
        %v857 = vpow.pop %v856
        %v858 = vmul.f32 %v812, 1.442695
        %v859 = vpow.pop %v858
        %v860 = vmul.f32 %v813, 1.442695
        %v861 = vpow.pop %v860
        %v862 = vmul.f32 %v814, 1.442695
        %v863 = vpow.pop %v862
        %v864 = vmul.f32 %v815, 1.442695
        %v865 = vpow.pop %v864
        %v866 = vmul.f32 %v816, 1.442695
        %v867 = vpow.pop %v866
        %v868 = vmul.f32 %v817, 1.442695
        %v869 = vpow.pop %v868
        %v870 = vmul.f32 %v818, 1.442695
        %v871 = vpow.pop %v870
        %v872 = vmul.f32 %v819, 1.442695
        %v873 = vpow.pop %v872
        %v874 = vmul.f32 %v820, 1.442695
        %v875 = vpow.pop %v874
        %v876 = vmul.f32 %v821, 1.442695
        %v877 = vpow.pop %v876
        %v878 = vmul.f32 %v822, 1.442695
        %v879 = vpow.pop %v878
        %v880 = vmul.f32 %v823, 1.442695
        %v881 = vpow.pop %v880
        %v882 = vmul.f32 %v824, 1.442695
        %v883 = vpow.pop %v882
        %v884 = vmul.f32 %v825, 1.442695
        %v885 = vpow.pop %v884
        %v886 = vmul.f32 %v826, 1.442695
        %v887 = vpow.pop %v886
        %v888 = vmul.f32 %v827, 1.442695
        %v889 = vpow.pop %v888
        %v890 = vmul.f32 %v828, 1.442695
        %v891 = vpow.pop %v890
        %v892 = vmul.f32 %v829, 1.442695
        %v893 = vpow.pop %v892
        %v894 = vadd.f32 %v831, %v833
        %v895 = vadd.f32 %v894, %v835
        %v896 = vadd.f32 %v895, %v837
        %v897 = vadd.f32 %v896, %v839
        %v898 = vadd.f32 %v897, %v841
        %v899 = vadd.f32 %v898, %v843
        %v900 = vadd.f32 %v899, %v845
        %v901 = vadd.f32 %v900, %v847
        %v902 = vadd.f32 %v901, %v849
        %v903 = vadd.f32 %v902, %v851
        %v904 = vadd.f32 %v903, %v853
        %v905 = vadd.f32 %v904, %v855
        %v906 = vadd.f32 %v905, %v857
        %v907 = vadd.f32 %v906, %v859
        %v908 = vadd.f32 %v907, %v861
        %v909 = vadd.f32 %v908, %v863
        %v910 = vadd.f32 %v909, %v865
        %v911 = vadd.f32 %v910, %v867
        %v912 = vadd.f32 %v911, %v869
        %v913 = vadd.f32 %v912, %v871
        %v914 = vadd.f32 %v913, %v873
        %v915 = vadd.f32 %v914, %v875
        %v916 = vadd.f32 %v915, %v877
        %v917 = vadd.f32 %v916, %v879
        %v918 = vadd.f32 %v917, %v881
        %v919 = vadd.f32 %v918, %v883
        %v920 = vadd.f32 %v919, %v885
        %v921 = vadd.f32 %v920, %v887
        %v922 = vadd.f32 %v921, %v889
        %v923 = vadd.f32 %v922, %v891
        %v924 = vadd.f32 %v923, %v893
        %v925 = vrot.slane %v924, 4
        %v926 = vadd.f32 %v924, %v925
        %v927 = vrot.slane %v926, 2
        %v928 = vadd.f32 %v926, %v927
        %v929 = vrot.slane %v928, 1
        %v930 = vadd.f32 %v928, %v929
        %v931 = vlog2.pop %v930
        %v932 = vmul.f32 %v931, 0.6931472
        %v933 = vadd.f32 %v932, %v797
        %v934 = vld [vmem:[%s257] sm:$0x1]
        %v935 = vsub.f32 %v933, %v934
        %936 = vst [vmem:[%s249] sm:$0x1] %v935
        %s937 = sand.u32 %s125, 1
        %s938 = scalar_lea.sflag [#allocation4], %s937
        %s939 = sand.u32 %s125, 1
        %s940 = scalar_lea.vmem [#allocation7], %s939
        // Predicated region
        $region41: #{tpu_custom_call.1} parent=31 // pred_check
          %p941 = pneg %p135
        $region42: #{tpu_custom_call.1} parent=31 // pred_check_branch
          %943 = sbr.rel (%p941) target = $region44
        $region43: #{tpu_custom_call.1} parent=31 // pred_region
          %s945 = ssub.s32 16, 16
          %946 = vsyncadd %s938, %s945
          %s947 = smul.addr %s25, 2
          %s948 = sadd.s32 %s26, %s947
          %s949 = smul.addr %s948, 16
          %s950 = scalar_lea.hbm %s3, %s949
          %s952 = sshll.u32 %s940, 4
          %s953 = int_to_ptr.vmem [resolvable:$true] %s952
          %955 = dma.vmem_to_hbm [thread:$0]  %s953, 16, %s950, %s938
        $region44: #{tpu_custom_call.1} parent=31 // pred_fallthru
          _
      $region32: #{tpu_custom_call.1} parent=5 // pred_fallthru
        _
      %p956 = scmp.le.s32.totalorder 2, %s16
      // Predicated region
      $region45: #{tpu_custom_call.1} parent=5 // pred_check
        %p957 = pneg %p956
      $region46: #{tpu_custom_call.1} parent=5 // pred_check_branch
        %959 = sbr.rel (%p957) target = $region48
      $region47: #{tpu_custom_call.1} parent=5 // pred_region
        %s960 = ssub.s32 %s16, 2
        // Predicated region
        $region49: #{tpu_custom_call.1} parent=47 // pred_check
          %p961 = pneg %p141
        $region50: #{tpu_custom_call.1} parent=47 // pred_check_branch
          %963 = sbr.rel (%p961) target = $region52
        $region51: #{tpu_custom_call.1} parent=47 // pred_region
          %s964 = sand.u32 %s126, 1
          %s965 = scalar_lea.sflag [#allocation4], %s964
          %s966 = sand.u32 %s126, 1
          %s967 = scalar_lea.vmem [#allocation7], %s966
          %968 = dma.done %s965, 16
        $region52: #{tpu_custom_call.1} parent=47 // pred_fallthru
          _
      $region48: #{tpu_custom_call.1} parent=5 // pred_fallthru
        _
    $region6: #{tpu_custom_call.1} parent=1 // loop_footer
      %s20 = sadd.s32 1, %s16
    $region7: #{tpu_custom_call.1} parent=1 // loop_footer_branch
      %15 = sbr.rel target = $region3
    $region8: #{tpu_custom_call.1} parent=1 // loop_exit
      _
    %969 = vsyncpa [#allocation3], 1
    %s970 = scalar_lea.sflag [#allocation3], 1
    %971 = vsyncpa %s970, 1
    %972 = vsyncpa [#allocation6], 1
    %s973 = scalar_lea.sflag [#allocation6], 1
    %974 = vsyncpa %s973, 1
    %975 = vsyncpa [#allocation4], 1
    %s976 = scalar_lea.sflag [#allocation4], 1
    %977 = vsyncpa %s976, 1

</llo_original>
